<compile_context>
chip_gen: v5e
topology: v5e:2x2
jax: 0.10.0
libtpu: 0.0.40
codegen_flags: <defaults>
</compile_context>

<pallas_src>
import math

import jax
import jax.numpy as jnp
from jax.experimental import pallas as pl
from jax.experimental.pallas import tpu as pltpu

# Small demo shapes consistent with the module's forward
# (input_dim = latent feeding the decoder, hidden_size, ins_dim, lab_dim).
BATCH = 8
INPUT_DIM = 64
HIDDEN = 256
INS_DIM = 384
LAB_DIM = 256


def _decoder_kernel(x_blk_ref,
                    w_fc_ref, b_insfc_ref, b_labfc_ref,
                    w_mix_ref,
                    w_out_ref, b_insout_ref, b_labout_ref,
                    out_ins_ref, out_lab_ref):
    f32, bf16 = jnp.float32, jnp.bfloat16
    two_b = x_blk_ref.shape[0]
    b = two_b // 2
    h = w_fc_ref.shape[1]
    ins_dim = out_ins_ref.shape[1]

    # Row-block predicate: rows [0, B) are the `ins` branch, rows [B, 2B) the
    # `lab` branch.  Computed once, reused for the bias add and mixing select.
    is_ins = jax.lax.broadcasted_iota(jnp.int32, (two_b, h), 0) < b

    # --- FC stage: s = relu([ins_fc(input_ins); lab_fc(input_lab)]) ---------
    # x_blk is block-diagonal, so one [2B,2D]@[2D,H] matmul yields the stacked
    # hidden directly.
    s_pre = jnp.dot(x_blk_ref[...].astype(bf16), w_fc_ref[...],
                    preferred_element_type=f32)                   # [2B, H]
    bias_fc = jnp.where(is_ins, b_insfc_ref[...], b_labfc_ref[...])
    s = jnp.maximum(s_pre + bias_fc, 0.0)                         # [2B, H] f32

    # --- attention: att = softmax(ins^T @ lab / sqrt(H), dim=1) -------------
    ins_b = s[:b, :].astype(bf16)
    lab_b = s[b:, :].astype(bf16)
    logits = jax.lax.dot_general(
        ins_b, lab_b, dimension_numbers=(((0,), (0,)), ((), ())),
        preferred_element_type=f32) * (1.0 / math.sqrt(h))        # [H, H] f32
    row_max = jnp.max(logits, axis=1, keepdims=True)              # [H, 1]
    e = jnp.exp(logits - row_max)                                 # [H, H] f32
    inv_rowsum = pl.reciprocal(jnp.sum(e, axis=1, keepdims=True), approx=True)
    # reciprocal-multiply fused with the bf16 cast: only the bf16 att consumed
    # by the matmul below is materialized.
    att_b = (e * inv_rowsum).astype(bf16)                         # [H, H] bf16

    # --- mixing: s += [ins @ ins_weight; lab @ lab_weight] @ att ------------
    m_wide = jnp.dot(s.astype(bf16), w_mix_ref[...],
                     preferred_element_type=f32)                  # [2B, 2H]
    m_stack = jnp.where(is_ins, m_wide[:, :h], m_wide[:, h:])     # [2B, H]
    s = s + jnp.dot(m_stack.astype(bf16), att_b,
                    preferred_element_type=f32)                   # [2B, H]

    # --- output: [ins_out(ins); lab_out(lab)] --------------------------------
    out_wide = jnp.dot(s.astype(bf16), w_out_ref[...],
                       preferred_element_type=f32)                # [2B, I+L]
    out_ins_ref[...] = out_wide[:b, :ins_dim] + b_insout_ref[...]
    out_lab_ref[...] = out_wide[b:, ins_dim:] + b_labout_ref[...]


def _init_linear(key, in_dim, out_dim):
    """PyTorch nn.Linear default init; weight pre-transposed to [in, out].

    Weights are stored bf16 (MXU operand path); biases stay f32.
    """
    kw, kb = jax.random.split(key)
    bound = 1.0 / math.sqrt(in_dim)
    w = jax.random.uniform(kw, (in_dim, out_dim), jnp.float32, -bound, bound)
    b = jax.random.uniform(kb, (1, out_dim), jnp.float32, -bound, bound)
    return w.astype(jnp.bfloat16), b


def init_params(key, input_dim, ins_dim, lab_dim, hidden):
    """Per-branch parameters, matching the PyTorch module."""
    k = jax.random.split(key, 6)
    w_insfc, b_insfc = _init_linear(k[0], input_dim, hidden)
    w_labfc, b_labfc = _init_linear(k[1], input_dim, hidden)
    w_insout, b_insout = _init_linear(k[2], hidden, ins_dim)
    w_labout, b_labout = _init_linear(k[3], hidden, lab_dim)
    stdv = 1.0 / math.sqrt(hidden)   # stdv = 1/sqrt(ins_weight.size(1))
    ins_w = jax.random.uniform(k[4], (hidden, hidden), jnp.float32,
                               -stdv, stdv).astype(jnp.bfloat16)
    lab_w = jax.random.uniform(k[5], (hidden, hidden), jnp.float32,
                               -stdv, stdv).astype(jnp.bfloat16)
    return (w_insfc, b_insfc, w_labfc, b_labfc, ins_w, lab_w,
            w_insout, b_insout, w_labout, b_labout)


def pack_params(params):
    """Fuse per-branch weights into the wider operands the kernel expects.

    Done once at parameter-prep time (outside the kernel / jit hot path).
    """
    (w_insfc, b_insfc, w_labfc, b_labfc, ins_w, lab_w,
     w_insout, b_insout, w_labout, b_labout) = params
    w_fc = jnp.concatenate([w_insfc, w_labfc], axis=0)     # [2D, H]  bf16
    w_mix = jnp.concatenate([ins_w, lab_w], axis=1)        # [H, 2H]  bf16
    w_out = jnp.concatenate([w_insout, w_labout], axis=1)  # [H, I+L] bf16
    return (w_fc, b_insfc, b_labfc, w_mix, w_out, b_insout, b_labout)


@jax.jit
def vae_decoder_forward(input_ins, input_lab, packed):
    """VAE_Decoder.forward(input_ins, input_lab) -> (output_ins, output_lab)."""
    (w_fc, b_insfc, b_labfc, w_mix, w_out, b_insout, b_labout) = packed
    batch, input_dim = input_ins.shape
    ins_dim = b_insout.shape[1]
    lab_dim = b_labout.shape[1]

    # Block-diagonal stacked input: row block 0 hits w_insfc, row block 1 hits
    # w_labfc, so one matmul produces the stacked hidden.  (Tiny XLA packing
    # op outside the kernel; ~8 KB at these shapes.)
    zeros = jnp.zeros((batch, input_dim), input_ins.dtype)
    x_blk = jnp.concatenate(
        [jnp.concatenate([input_ins, zeros], axis=1),
         jnp.concatenate([zeros, input_lab], axis=1)], axis=0)   # [2B, 2D]

    vmem = pl.BlockSpec(memory_space=pltpu.MemorySpace.VMEM)
    flat = [x_blk, w_fc, b_insfc, b_labfc, w_mix, w_out, b_insout, b_labout]

    return pl.pallas_call(
        _decoder_kernel,
        out_shape=(jax.ShapeDtypeStruct((batch, ins_dim), jnp.float32),
                   jax.ShapeDtypeStruct((batch, lab_dim), jnp.float32)),
        in_specs=[vmem] * len(flat),
        out_specs=(vmem, vmem),
        compiler_params=pltpu.CompilerParams(
            vmem_limit_bytes=32 * 1024 * 1024),
    )(*flat)


def _decoder_ref(input_ins, input_lab, params):
    """Pure-JAX reference (per-branch weights, identical bf16 MXU handling)."""
    (w_insfc, b_insfc, w_labfc, b_labfc, ins_w, lab_w,
     w_insout, b_insout, w_labout, b_labout) = params
    bf16, f32 = jnp.bfloat16, jnp.float32

    def lin(x, w, b):
        return jnp.dot(x.astype(bf16), w, preferred_element_type=f32) + b

    ins = jax.nn.relu(lin(input_ins, w_insfc, b_insfc))
    lab = jax.nn.relu(lin(input_lab, w_labfc, b_labfc))
    att = jnp.dot(ins.T, lab, preferred_element_type=f32) / math.sqrt(ins.shape[1])
    att = jax.nn.softmax(att, axis=1).astype(bf16)
    ins = ins + jnp.dot(
        jnp.dot(ins.astype(bf16), ins_w, preferred_element_type=f32).astype(bf16),
        att, preferred_element_type=f32)
    lab = lab + jnp.dot(
        jnp.dot(lab.astype(bf16), lab_w, preferred_element_type=f32).astype(bf16),
        att, preferred_element_type=f32)
    return lin(ins, w_insout, b_insout), lin(lab, w_labout, b_labout)


if __name__ == "__main__":
    key = jax.random.PRNGKey(0)
    k_ins, k_lab, k_params = jax.random.split(key, 3)

    input_ins = jax.random.normal(k_ins, (BATCH, INPUT_DIM), jnp.float32)
    input_lab = jax.random.normal(k_lab, (BATCH, INPUT_DIM), jnp.float32)
    params = init_params(k_params, INPUT_DIM, INS_DIM, LAB_DIM, HIDDEN)
    packed = pack_params(params)

    out_ins, out_lab = vae_decoder_forward(input_ins, input_lab, packed)
    jax.block_until_ready((out_ins, out_lab))

    ref_ins, ref_lab = _decoder_ref(input_ins, input_lab, params)
    assert out_ins.shape == (BATCH, INS_DIM)
    assert out_lab.shape == (BATCH, LAB_DIM)
    assert bool(jnp.isfinite(out_ins).all()) and bool(jnp.isfinite(out_lab).all())
    assert jnp.allclose(out_ins, ref_ins, rtol=5e-2, atol=5e-2)
    assert jnp.allclose(out_lab, ref_lab, rtol=5e-2, atol=5e-2)
    print("KERNEL_OK")
</pallas_src>

<mosaic_0001>
module attributes {stable_mosaic.version = 11 : i64} {
  func.func @_decoder_kernel(%arg0: memref<16x128xf32, #tpu.memory_space<vmem>>, %arg1: memref<128x256xbf16, #tpu.memory_space<vmem>>, %arg2: memref<1x256xf32, #tpu.memory_space<vmem>>, %arg3: memref<1x256xf32, #tpu.memory_space<vmem>>, %arg4: memref<256x512xbf16, #tpu.memory_space<vmem>>, %arg5: memref<256x640xbf16, #tpu.memory_space<vmem>>, %arg6: memref<1x384xf32, #tpu.memory_space<vmem>>, %arg7: memref<1x256xf32, #tpu.memory_space<vmem>>, %arg8: memref<8x384xf32, #tpu.memory_space<vmem>>, %arg9: memref<8x256xf32, #tpu.memory_space<vmem>>) attributes {dimension_semantics = [], scalar_prefetch = 0 : i64, scratch_operands = 0 : i64, tpu.core_type = #tpu.core_type<tc>} {
    %0 = tpu.iota {dimensions = array<i32: 0>} : vector<16x256xi32>
    %c8_i32 = arith.constant 8 : i32
    %1 = vector.broadcast %c8_i32 : i32 to vector<16x256xi32>
    %2 = arith.cmpi slt, %0, %1 : vector<16x256xi32>
    %c0 = arith.constant 0 : index
    %c0_0 = arith.constant 0 : index
    %3 = vector.load %arg0[%c0, %c0_0] : memref<16x128xf32, #tpu.memory_space<vmem>>, vector<16x128xf32>
    %4 = arith.truncf %3 : vector<16x128xf32> to vector<16x128xbf16>
    %c0_1 = arith.constant 0 : index
    %c0_2 = arith.constant 0 : index
    %5 = vector.load %arg1[%c0_1, %c0_2] : memref<128x256xbf16, #tpu.memory_space<vmem>>, vector<128x256xbf16>
    %cst = arith.constant dense<0.000000e+00> : vector<16x256xf32>
    %6 = tpu.matmul %4, %5, %cst {dimension_numbers = #tpu.dot_dimension_numbers<[1], [0], [0], [1], [0, 0, 1, 1], [], []>} : vector<16x128xbf16>, vector<128x256xbf16>, vector<16x256xf32> -> vector<16x256xf32>
    %c0_3 = arith.constant 0 : index
    %c0_4 = arith.constant 0 : index
    %7 = vector.load %arg2[%c0_3, %c0_4] : memref<1x256xf32, #tpu.memory_space<vmem>>, vector<1x256xf32>
    %c0_5 = arith.constant 0 : index
    %c0_6 = arith.constant 0 : index
    %8 = vector.load %arg3[%c0_5, %c0_6] : memref<1x256xf32, #tpu.memory_space<vmem>>, vector<1x256xf32>
    %9 = vector.shape_cast %7 : vector<1x256xf32> to vector<1x256xf32>
    %10 = vector.broadcast %9 : vector<1x256xf32> to vector<16x256xf32>
    %11 = vector.shape_cast %8 : vector<1x256xf32> to vector<1x256xf32>
    %12 = vector.broadcast %11 : vector<1x256xf32> to vector<16x256xf32>
    %13 = arith.select %2, %10, %12 : vector<16x256xi1>, vector<16x256xf32>
    %14 = arith.addf %6, %13 : vector<16x256xf32>
    %cst_7 = arith.constant 0.000000e+00 : f32
    %15 = vector.broadcast %cst_7 : f32 to vector<16x256xf32>
    %16 = arith.maximumf %14, %15 : vector<16x256xf32>
    %17 = vector.extract_strided_slice %16 {offsets = [0, 0], sizes = [8, 256], strides = [1, 1]} : vector<16x256xf32> to vector<8x256xf32>
    %18 = arith.truncf %17 : vector<8x256xf32> to vector<8x256xbf16>
    %19 = vector.extract_strided_slice %16 {offsets = [8, 0], sizes = [8, 256], strides = [1, 1]} : vector<16x256xf32> to vector<8x256xf32>
    %20 = arith.truncf %19 : vector<8x256xf32> to vector<8x256xbf16>
    %cst_8 = arith.constant dense<0.000000e+00> : vector<256x256xf32>
    %21 = tpu.matmul %18, %20, %cst_8 {dimension_numbers = #tpu.dot_dimension_numbers<[0], [0], [1], [1], [0, 1, 1, 1], [], []>} : vector<8x256xbf16>, vector<8x256xbf16>, vector<256x256xf32> -> vector<256x256xf32>
    %cst_9 = arith.constant 6.250000e-02 : f32
    %22 = vector.broadcast %cst_9 : f32 to vector<256x256xf32>
    %23 = arith.mulf %21, %22 : vector<256x256xf32>
    %cst_10 = arith.constant dense<0xFF800000> : vector<256xf32>
    %24 = vector.multi_reduction <maximumf>, %23, %cst_10 [1] : vector<256x256xf32> to vector<256xf32>
    %25 = vector.shape_cast %24 : vector<256xf32> to vector<256x1xf32>
    %26 = vector.broadcast %25 : vector<256x1xf32> to vector<256x256xf32>
    %27 = arith.subf %23, %26 : vector<256x256xf32>
    %28 = math.exp %27 : vector<256x256xf32>
    %cst_11 = arith.constant dense<0.000000e+00> : vector<256xf32>
    %29 = vector.multi_reduction <add>, %28, %cst_11 [1] : vector<256x256xf32> to vector<256xf32>
    %30 = vector.shape_cast %29 : vector<256xf32> to vector<256x1xf32>
    %31 = tpu.reciprocal %30 {approx = true} : vector<256x1xf32> -> vector<256x1xf32>
    %32 = vector.broadcast %31 : vector<256x1xf32> to vector<256x256xf32>
    %33 = arith.mulf %28, %32 : vector<256x256xf32>
    %34 = arith.truncf %33 : vector<256x256xf32> to vector<256x256xbf16>
    %35 = arith.truncf %16 : vector<16x256xf32> to vector<16x256xbf16>
    %c0_12 = arith.constant 0 : index
    %c0_13 = arith.constant 0 : index
    %36 = vector.load %arg4[%c0_12, %c0_13] : memref<256x512xbf16, #tpu.memory_space<vmem>>, vector<256x512xbf16>
    %cst_14 = arith.constant dense<0.000000e+00> : vector<16x512xf32>
    %37 = tpu.matmul %35, %36, %cst_14 {dimension_numbers = #tpu.dot_dimension_numbers<[1], [0], [0], [1], [0, 0, 1, 1], [], []>} : vector<16x256xbf16>, vector<256x512xbf16>, vector<16x512xf32> -> vector<16x512xf32>
    %38 = vector.extract_strided_slice %37 {offsets = [0, 0], sizes = [16, 256], strides = [1, 1]} : vector<16x512xf32> to vector<16x256xf32>
    %39 = vector.extract_strided_slice %37 {offsets = [0, 256], sizes = [16, 256], strides = [1, 1]} : vector<16x512xf32> to vector<16x256xf32>
    %40 = arith.select %2, %38, %39 : vector<16x256xi1>, vector<16x256xf32>
    %41 = arith.truncf %40 : vector<16x256xf32> to vector<16x256xbf16>
    %cst_15 = arith.constant dense<0.000000e+00> : vector<16x256xf32>
    %42 = tpu.matmul %41, %34, %cst_15 {dimension_numbers = #tpu.dot_dimension_numbers<[1], [0], [0], [1], [0, 0, 1, 1], [], []>} : vector<16x256xbf16>, vector<256x256xbf16>, vector<16x256xf32> -> vector<16x256xf32>
    %43 = arith.addf %16, %42 : vector<16x256xf32>
    %44 = arith.truncf %43 : vector<16x256xf32> to vector<16x256xbf16>
    %c0_16 = arith.constant 0 : index
    %c0_17 = arith.constant 0 : index
    %45 = vector.load %arg5[%c0_16, %c0_17] : memref<256x640xbf16, #tpu.memory_space<vmem>>, vector<256x640xbf16>
    %cst_18 = arith.constant dense<0.000000e+00> : vector<16x640xf32>
    %46 = tpu.matmul %44, %45, %cst_18 {dimension_numbers = #tpu.dot_dimension_numbers<[1], [0], [0], [1], [0, 0, 1, 1], [], []>} : vector<16x256xbf16>, vector<256x640xbf16>, vector<16x640xf32> -> vector<16x640xf32>
    %47 = vector.extract_strided_slice %46 {offsets = [0, 0], sizes = [8, 384], strides = [1, 1]} : vector<16x640xf32> to vector<8x384xf32>
    %c0_19 = arith.constant 0 : index
    %c0_20 = arith.constant 0 : index
    %48 = vector.load %arg6[%c0_19, %c0_20] : memref<1x384xf32, #tpu.memory_space<vmem>>, vector<1x384xf32>
    %49 = vector.broadcast %48 : vector<1x384xf32> to vector<8x384xf32>
    %50 = arith.addf %47, %49 : vector<8x384xf32>
    %c0_21 = arith.constant 0 : index
    %c0_22 = arith.constant 0 : index
    %51 = vector.load %arg8[%c0_21, %c0_22] : memref<8x384xf32, #tpu.memory_space<vmem>>, vector<8x384xf32>
    tpu.vector_store %arg8[%c0_21, %c0_22], %50 {strides = array<i32>} : memref<8x384xf32, #tpu.memory_space<vmem>>, vector<8x384xf32>,
    %52 = vector.extract_strided_slice %46 {offsets = [8, 384], sizes = [8, 256], strides = [1, 1]} : vector<16x640xf32> to vector<8x256xf32>
    %c0_23 = arith.constant 0 : index
    %c0_24 = arith.constant 0 : index
    %53 = vector.load %arg7[%c0_23, %c0_24] : memref<1x256xf32, #tpu.memory_space<vmem>>, vector<1x256xf32>
    %54 = vector.broadcast %53 : vector<1x256xf32> to vector<8x256xf32>
    %55 = arith.addf %52, %54 : vector<8x256xf32>
    %c0_25 = arith.constant 0 : index
    %c0_26 = arith.constant 0 : index
    %56 = vector.load %arg9[%c0_25, %c0_26] : memref<8x256xf32, #tpu.memory_space<vmem>>, vector<8x256xf32>
    tpu.vector_store %arg9[%c0_25, %c0_26], %55 {strides = array<i32>} : memref<8x256xf32, #tpu.memory_space<vmem>>, vector<8x256xf32>,
    return
  }
}

</mosaic_0001>

<llo_original>
// kernel: vae_decoder_forward.1
$region0: #{vae_decoder_forward.1}
  #allocation0 [shape = 'u32[]', space=smem, size = 0x4, offset = 0x4, fixed_abs, tag = 'smem constant byte address 0x4 - core index']
  #allocation1 [shape = 'u32[72,128]{1,0:T(1,128)}', space=vmem, size = 0x9000, scoped, tag = 'internal scratch']
  %s0 = inlined_call_operand.vmem [shape: f32[16,128], index: 0, kind: input, shape index: {}]
  %s1 = inlined_call_operand.hbm [shape: bf16[128,256], index: 1, kind: input, shape index: {}]
  %s2 = inlined_call_operand.vmem [shape: f32[1,256], index: 2, kind: input, shape index: {}]
  %s3 = inlined_call_operand.vmem [shape: f32[1,256], index: 3, kind: input, shape index: {}]
  %s4 = inlined_call_operand.hbm [shape: bf16[256,512], index: 4, kind: input, shape index: {}]
  %s5 = inlined_call_operand.hbm [shape: bf16[256,640], index: 5, kind: input, shape index: {}]
  %s6 = inlined_call_operand.vmem [shape: f32[1,384], index: 6, kind: input, shape index: {}]
  %s7 = inlined_call_operand.vmem [shape: f32[1,256], index: 7, kind: input, shape index: {}]
  %s8 = inlined_call_operand.hbm [shape: f32[8,384], index: 8, kind: output, shape index: {0}]
  %s9 = inlined_call_operand.hbm [shape: f32[8,256], index: 9, kind: output, shape index: {1}]
  %10 = xla_tuple %s8, %s9
  %s11 = sld [smem:[#allocation0]]
  $region62: #{vae_decoder_forward.1} parent=0
    _
  %s13 = ssub.s32 1, %s11
  %s14 = scalar_select 0, %s13, %s11
  $region1: #{vae_decoder_forward.1} parent=0
    #allocation2 [shape = 'u8[65536]{0}', space=vmem, size = 0x10000, scoped, tag = 'input window, operand 1, single buffered']
    #allocation3 [shape = 's32[1]{0}', space=sflag, size = 0x4, scoped, tag = 'scoped memory for vae_decoder_forward.1']
    #allocation4 [shape = 's32[1]{0}', space=sflag, size = 0x4, scoped, tag = 'scoped memory for vae_decoder_forward.1']
    #allocation5 [shape = 'u8[262144]{0}', space=vmem, size = 0x40000, scoped, tag = 'input window, operand 4, single buffered']
    #allocation6 [shape = 's32[1]{0}', space=sflag, size = 0x4, scoped, tag = 'scoped memory for vae_decoder_forward.1']
    #allocation7 [shape = 'u8[327680]{0}', space=vmem, size = 0x50000, scoped, tag = 'input window, operand 5, single buffered']
    #allocation8 [shape = 'u8[12288]{0}', space=vmem, size = 0x3000, scoped, tag = 'output window, operand 0, single buffered']
    #allocation9 [shape = 'u8[8192]{0}', space=vmem, size = 0x2000, scoped, tag = 'output window, operand 1, single buffered']
    #allocation10 [shape = 's32[1]{0}', space=sflag, size = 0x4, scoped, tag = 'scoped memory for vae_decoder_forward.1']
    %15 = vsyncpa [#allocation3], 0
    %16 = vsyncpa [#allocation6], 0
    %17 = vsyncpa [#allocation4], 0
    %18 = vsyncpa [#allocation10], 0
    // Predicated region
    $region2: #{vae_decoder_forward.1} parent=1 // pred_check
      _
    $region3: #{vae_decoder_forward.1} parent=1 // pred_check_branch
      %20 = sbr.rel (0) target = $region5
    $region4: #{vae_decoder_forward.1} parent=1 // pred_region
      _
    $region5: #{vae_decoder_forward.1} parent=1 // pred_fallthru
      _
    // Predicated region
    $region6: #{vae_decoder_forward.1} parent=1 // pred_check
      _
    $region7: #{vae_decoder_forward.1} parent=1 // pred_check_branch
      %22 = sbr.rel (0) target = $region9
    $region8: #{vae_decoder_forward.1} parent=1 // pred_region
      %24 = vsyncadd [#allocation3], 0
      %s25 = sshll.u32 %s1, 4
      %s26 = int_to_ptr.hbm [resolvable:$true] %s25
      %s27 = sshll.u32 [#allocation2], 4
      %s28 = int_to_ptr.vmem [resolvable:$true] %s27
      %33 = dma.hbm_to_vmem [thread:$0]  %s26, 2048, %s28, [#allocation3], 128, 128, 8
    $region9: #{vae_decoder_forward.1} parent=1 // pred_fallthru
      _
    // Predicated region
    $region10: #{vae_decoder_forward.1} parent=1 // pred_check
      _
    $region11: #{vae_decoder_forward.1} parent=1 // pred_check_branch
      %35 = sbr.rel (0) target = $region13
    $region12: #{vae_decoder_forward.1} parent=1 // pred_region
      _
    $region13: #{vae_decoder_forward.1} parent=1 // pred_fallthru
      _
    // Predicated region
    $region14: #{vae_decoder_forward.1} parent=1 // pred_check
      _
    $region15: #{vae_decoder_forward.1} parent=1 // pred_check_branch
      %37 = sbr.rel (0) target = $region17
    $region16: #{vae_decoder_forward.1} parent=1 // pred_region
      _
    $region17: #{vae_decoder_forward.1} parent=1 // pred_fallthru
      _
    // Predicated region
    $region18: #{vae_decoder_forward.1} parent=1 // pred_check
      _
    $region19: #{vae_decoder_forward.1} parent=1 // pred_check_branch
      %39 = sbr.rel (0) target = $region21
    $region20: #{vae_decoder_forward.1} parent=1 // pred_region
      %41 = vsyncadd [#allocation6], 0
      %s42 = sshll.u32 %s4, 4
      %s43 = int_to_ptr.hbm [resolvable:$true] %s42
      %s44 = sshll.u32 [#allocation5], 4
      %s45 = int_to_ptr.vmem [resolvable:$true] %s44
      %50 = dma.hbm_to_vmem [thread:$0]  %s43, 8192, %s45, [#allocation6], 256, 256, 16
    $region21: #{vae_decoder_forward.1} parent=1 // pred_fallthru
      _
    // Predicated region
    $region22: #{vae_decoder_forward.1} parent=1 // pred_check
      _
    $region23: #{vae_decoder_forward.1} parent=1 // pred_check_branch
      %52 = sbr.rel (0) target = $region25
    $region24: #{vae_decoder_forward.1} parent=1 // pred_region
      %54 = vsyncadd [#allocation6], 0
      %s55 = sshll.u32 %s5, 4
      %s56 = int_to_ptr.hbm [resolvable:$true] %s55
      %s57 = sshll.u32 [#allocation7], 4
      %s58 = int_to_ptr.vmem [resolvable:$true] %s57
      %63 = dma.hbm_to_vmem [thread:$0]  %s56, 10240, %s58, [#allocation6], 320, 320, 20
    $region25: #{vae_decoder_forward.1} parent=1 // pred_fallthru
      _
    // Predicated region
    $region26: #{vae_decoder_forward.1} parent=1 // pred_check
      _
    $region27: #{vae_decoder_forward.1} parent=1 // pred_check_branch
      %65 = sbr.rel (0) target = $region29
    $region28: #{vae_decoder_forward.1} parent=1 // pred_region
      _
    $region29: #{vae_decoder_forward.1} parent=1 // pred_fallthru
      _
    // Predicated region
    $region30: #{vae_decoder_forward.1} parent=1 // pred_check
      _
    $region31: #{vae_decoder_forward.1} parent=1 // pred_check_branch
      %67 = sbr.rel (0) target = $region33
    $region32: #{vae_decoder_forward.1} parent=1 // pred_region
      _
    $region33: #{vae_decoder_forward.1} parent=1 // pred_fallthru
      _
    // Predicated region
    $region34: #{vae_decoder_forward.1} parent=1 // pred_check
      _
    $region35: #{vae_decoder_forward.1} parent=1 // pred_check_branch
      %69 = sbr.rel (0) target = $region37
    $region36: #{vae_decoder_forward.1} parent=1 // pred_region
      %71 = dma.done [#allocation3], 2048
    $region37: #{vae_decoder_forward.1} parent=1 // pred_fallthru
      _
    // Predicated region
    $region38: #{vae_decoder_forward.1} parent=1 // pred_check
      _
    $region39: #{vae_decoder_forward.1} parent=1 // pred_check_branch
      %73 = sbr.rel (0) target = $region41
    $region40: #{vae_decoder_forward.1} parent=1 // pred_region
      %75 = dma.done [#allocation6], 8192
    $region41: #{vae_decoder_forward.1} parent=1 // pred_fallthru
      _
    // Predicated region
    $region42: #{vae_decoder_forward.1} parent=1 // pred_check
      _
    $region43: #{vae_decoder_forward.1} parent=1 // pred_check_branch
      %77 = sbr.rel (0) target = $region45
    $region44: #{vae_decoder_forward.1} parent=1 // pred_region
      %79 = dma.done [#allocation6], 10240
    $region45: #{vae_decoder_forward.1} parent=1 // pred_fallthru
      _
    %v81 = vlaneseq
    %v82 = vshrl.u32 %v81, 7
    %v83 = vadd.s32 %v82, 8
    %vm84 = vcmp.lt.s32.totalorder %v82, 8
    %vm85 = vcmp.lt.s32.totalorder %v83, 8
    %v86 = vld [vmem:[%s0] sm:$0xff]
    %v87 = vld [vmem:[%s0 + $0x8] sm:$0xff]
    %v88 = vpack.c.bf16 %v87, %v86
    %v89 = vld [vmem:[#allocation2] sm:$0xff]
    %v90 = vld [vmem:[#allocation2 + $0x8] sm:$0xff]
    %v91 = vld [vmem:[#allocation2 + $0x10] sm:$0xff]
    %v92 = vld [vmem:[#allocation2 + $0x18] sm:$0xff]
    %v93 = vld [vmem:[#allocation2 + $0x20] sm:$0xff]
    %v94 = vld [vmem:[#allocation2 + $0x28] sm:$0xff]
    %v95 = vld [vmem:[#allocation2 + $0x30] sm:$0xff]
    %v96 = vld [vmem:[#allocation2 + $0x38] sm:$0xff]
    %v97 = vld [vmem:[#allocation2 + $0x40] sm:$0xff]
    %v98 = vld [vmem:[#allocation2 + $0x48] sm:$0xff]
    %v99 = vld [vmem:[#allocation2 + $0x50] sm:$0xff]
    %v100 = vld [vmem:[#allocation2 + $0x58] sm:$0xff]
    %v101 = vld [vmem:[#allocation2 + $0x60] sm:$0xff]
    %v102 = vld [vmem:[#allocation2 + $0x68] sm:$0xff]
    %v103 = vld [vmem:[#allocation2 + $0x70] sm:$0xff]
    %v104 = vld [vmem:[#allocation2 + $0x78] sm:$0xff]
    %v105 = vld [vmem:[%s2] sm:$0x3]
    %v106 = vld [vmem:[%s3] sm:$0x3]
    %v108 = vperm.slane %v105, 0
    %v109 = vperm.slane %v105, 1
    %v113 = vperm.slane %v106, 0
    %v114 = vperm.slane %v106, 1
    %v117 = vsel %vm84, %v108, %v113
    %v118 = vsel %vm84, %v109, %v114
    %v119 = vsel %vm85, %v108, %v113
    %v120 = vsel %vm85, %v109, %v114
    %v137 = vunpack.c.l.b16 %v89
    %v138 = vunpack.c.h.b16 %v89
    %v139 = vunpack.c.l.b16 %v90
    %v140 = vunpack.c.h.b16 %v90
    %v141 = vunpack.c.l.b16 %v91
    %v142 = vunpack.c.h.b16 %v91
    %v143 = vunpack.c.l.b16 %v92
    %v144 = vunpack.c.h.b16 %v92
    %v145 = vunpack.c.l.b16 %v93
    %v146 = vunpack.c.h.b16 %v93
    %v147 = vunpack.c.l.b16 %v94
    %v148 = vunpack.c.h.b16 %v94
    %v149 = vunpack.c.l.b16 %v95
    %v150 = vunpack.c.h.b16 %v95
    %v151 = vunpack.c.l.b16 %v96
    %v152 = vunpack.c.h.b16 %v96
    %v153 = vunpack.c.l.b16 %v97
    %v154 = vunpack.c.h.b16 %v97
    %v155 = vunpack.c.l.b16 %v98
    %v156 = vunpack.c.h.b16 %v98
    %v157 = vunpack.c.l.b16 %v99
    %v158 = vunpack.c.h.b16 %v99
    %v159 = vunpack.c.l.b16 %v100
    %v160 = vunpack.c.h.b16 %v100
    %v161 = vunpack.c.l.b16 %v101
    %v162 = vunpack.c.h.b16 %v101
    %v163 = vunpack.c.l.b16 %v102
    %v164 = vunpack.c.h.b16 %v102
    %v165 = vunpack.c.l.b16 %v103
    %v166 = vunpack.c.h.b16 %v103
    %v167 = vunpack.c.l.b16 %v104
    %v168 = vunpack.c.h.b16 %v104
    %v169 = vpack.c.b16 %v139, %v137
    %v170 = vpack.c.b16 %v140, %v138
    %v171 = vpack.c.b16 %v143, %v141
    %v172 = vpack.c.b16 %v144, %v142
    %v173 = vpack.c.b16 %v147, %v145
    %v174 = vpack.c.b16 %v148, %v146
    %v175 = vpack.c.b16 %v151, %v149
    %v176 = vpack.c.b16 %v152, %v150
    %v177 = vpack.c.b16 %v155, %v153
    %v178 = vpack.c.b16 %v156, %v154
    %v179 = vpack.c.b16 %v159, %v157
    %v180 = vpack.c.b16 %v160, %v158
    %v181 = vpack.c.b16 %v163, %v161
    %v182 = vpack.c.b16 %v164, %v162
    %v183 = vpack.c.b16 %v167, %v165
    %v184 = vpack.c.b16 %v168, %v166
    %201 = vmatpush.bf16.msra.mxu0 %v183
    %202 = vmatpush.bf16.msra.mxu0 %v181
    %203 = vmatpush.bf16.msra.mxu0 %v179
    %204 = vmatpush.bf16.msra.mxu0 %v177
    %205 = vmatpush.bf16.msra.mxu0 %v175
    %206 = vmatpush.bf16.msra.mxu0 %v173
    %207 = vmatpush.bf16.msra.mxu0 %v171
    %208 = vmatpush.bf16.msra.mxu0 %v169
    %209 = vmatmul.bf16.gmra.mxu0 %v88
    %v210 = vpop.f32.mrf.mxu0
    %v211 = vadd.f32 %v117, %v210
    %v212 = vpop.f32.mrf.mxu0
    %v213 = vadd.f32 %v119, %v212
    %214 = vdwg.mxu0
    %215 = vmatpush.bf16.msra.mxu0 %v184
    %216 = vmatpush.bf16.msra.mxu0 %v182
    %217 = vmatpush.bf16.msra.mxu0 %v180
    %218 = vmatpush.bf16.msra.mxu0 %v178
    %219 = vmatpush.bf16.msra.mxu0 %v176
    %220 = vmatpush.bf16.msra.mxu0 %v174
    %221 = vmatpush.bf16.msra.mxu0 %v172
    %222 = vmatpush.bf16.msra.mxu0 %v170
    %223 = vmatmul.bf16.gmra.mxu0 %v88
    %v224 = vpop.f32.mrf.mxu0
    %v225 = vadd.f32 %v118, %v224
    %v226 = vpop.f32.mrf.mxu0
    %v227 = vadd.f32 %v120, %v226
    %228 = vdwg.mxu0
    %v229 = vmax.f32 %v211, 0.0
    %v230 = vmax.f32 %v225, 0.0
    %v231 = vmax.f32 %v213, 0.0
    %v232 = vmax.f32 %v227, 0.0
    %v233 = vpack.c.bf16 %v229, %v229
    %v234 = vpack.c.bf16 %v230, %v230
    %v235 = vpack.c.bf16 %v231, %v231
    %v236 = vpack.c.bf16 %v232, %v232
    %237 = vxpose.binary.xlu0.c.b16.start [1/16] %v234, %v233, 128
    %238 = vxpose.binary.xlu0.c.b16.cont [2/16] 0, 0, 128
    %239 = vxpose.binary.xlu0.c.b16.cont [3/16] 0, 0, 128
    %240 = vxpose.binary.xlu0.c.b16.cont [4/16] 0, 0, 128
    %241 = vxpose.binary.xlu0.c.b16.cont [5/16] 0, 0, 128
    %242 = vxpose.binary.xlu0.c.b16.cont [6/16] 0, 0, 128
    %243 = vxpose.binary.xlu0.c.b16.cont [7/16] 0, 0, 128
    %244 = vxpose.binary.xlu0.c.b16.end [8/16] 0, 0, 128
    %v245 = vpop.trf.xlu0
    %v246 = vpop.trf.xlu0
    %v247 = vpop.trf.xlu0
    %v248 = vpop.trf.xlu0
    %v249 = vpop.trf.xlu0
    %v250 = vpop.trf.xlu0
    %v251 = vpop.trf.xlu0
    %v252 = vpop.trf.xlu0
    %v253 = vpop.trf.xlu0
    %v254 = vpop.trf.xlu0
    %v255 = vpop.trf.xlu0
    %v256 = vpop.trf.xlu0
    %v257 = vpop.trf.xlu0
    %v258 = vpop.trf.xlu0
    %v259 = vpop.trf.xlu0
    %v260 = vpop.trf.xlu0
    %vm261 = vcmask 64512
    %v263 = vsel %vm261, %v245, 0
    %v266 = vsel %vm261, %v247, 0
    %v269 = vsel %vm261, %v249, 0
    %v272 = vsel %vm261, %v251, 0
    %v275 = vsel %vm261, %v253, 0
    %v278 = vsel %vm261, %v255, 0
    %v281 = vsel %vm261, %v257, 0
    %v284 = vsel %vm261, %v259, 0
    %v287 = vsel %vm261, %v246, 0
    %v290 = vsel %vm261, %v248, 0
    %v293 = vsel %vm261, %v250, 0
    %v296 = vsel %vm261, %v252, 0
    %v299 = vsel %vm261, %v254, 0
    %v302 = vsel %vm261, %v256, 0
    %v305 = vsel %vm261, %v258, 0
    %v308 = vsel %vm261, %v260, 0
    %vm310 = vcmask 1043456
    %v312 = vsel %vm310, %v235, 0
    %v315 = vsel %vm310, %v236, 0
    %317 = vmatpush.bf16.msra.mxu0 0
    %318 = vmatpush.bf16.msra.mxu0 0
    %319 = vmatpush.bf16.msra.mxu0 0
    %320 = vmatpush.bf16.msra.mxu0 0
    %321 = vmatpush.bf16.msra.mxu0 0
    %322 = vmatpush.bf16.msra.mxu0 0
    %323 = vmatpush.bf16.msra.mxu0 0
    %324 = vmatpush.bf16.msra.mxu0 %v312
    %325 = vmatmul.bf16.gmra.mxu0 %v263
    %v326 = vpop.f32.mrf.mxu0
    %v327 = vadd.f32 0.0, %v326
    %v328 = vpop.f32.mrf.mxu0
    %v329 = vadd.f32 0.0, %v328
    %330 = vmatmul.bf16.gmra.mxu0 %v266
    %v331 = vpop.f32.mrf.mxu0
    %v332 = vadd.f32 0.0, %v331
    %v333 = vpop.f32.mrf.mxu0
    %v334 = vadd.f32 0.0, %v333
    %335 = vmatmul.bf16.gmra.mxu0 %v269
    %v336 = vpop.f32.mrf.mxu0
    %v337 = vadd.f32 0.0, %v336
    %v338 = vpop.f32.mrf.mxu0
    %v339 = vadd.f32 0.0, %v338
    %340 = vmatmul.bf16.gmra.mxu0 %v272
    %v341 = vpop.f32.mrf.mxu0
    %v342 = vadd.f32 0.0, %v341
    %v343 = vpop.f32.mrf.mxu0
    %v344 = vadd.f32 0.0, %v343
    %345 = vmatmul.bf16.gmra.mxu0 %v275
    %v346 = vpop.f32.mrf.mxu0
    %v347 = vadd.f32 0.0, %v346
    %v348 = vpop.f32.mrf.mxu0
    %v349 = vadd.f32 0.0, %v348
    %350 = vmatmul.bf16.gmra.mxu0 %v278
    %v351 = vpop.f32.mrf.mxu0
    %v352 = vadd.f32 0.0, %v351
    %v353 = vpop.f32.mrf.mxu0
    %v354 = vadd.f32 0.0, %v353
    %355 = vmatmul.bf16.gmra.mxu0 %v281
    %v356 = vpop.f32.mrf.mxu0
    %v357 = vadd.f32 0.0, %v356
    %v358 = vpop.f32.mrf.mxu0
    %v359 = vadd.f32 0.0, %v358
    %360 = vmatmul.bf16.gmra.mxu0 %v284
    %v361 = vpop.f32.mrf.mxu0
    %v362 = vadd.f32 0.0, %v361
    %v363 = vpop.f32.mrf.mxu0
    %v364 = vadd.f32 0.0, %v363
    %365 = vmatmul.bf16.gmra.mxu0 %v287
    %v366 = vpop.f32.mrf.mxu0
    %v367 = vadd.f32 0.0, %v366
    %v368 = vpop.f32.mrf.mxu0
    %v369 = vadd.f32 0.0, %v368
    %370 = vmatmul.bf16.gmra.mxu0 %v290
    %v371 = vpop.f32.mrf.mxu0
    %v372 = vadd.f32 0.0, %v371
    %v373 = vpop.f32.mrf.mxu0
    %v374 = vadd.f32 0.0, %v373
    %375 = vmatmul.bf16.gmra.mxu0 %v293
    %v376 = vpop.f32.mrf.mxu0
    %v377 = vadd.f32 0.0, %v376
    %v378 = vpop.f32.mrf.mxu0
    %v379 = vadd.f32 0.0, %v378
    %380 = vmatmul.bf16.gmra.mxu0 %v296
    %v381 = vpop.f32.mrf.mxu0
    %v382 = vadd.f32 0.0, %v381
    %v383 = vpop.f32.mrf.mxu0
    %v384 = vadd.f32 0.0, %v383
    %385 = vmatmul.bf16.gmra.mxu0 %v299
    %v386 = vpop.f32.mrf.mxu0
    %v387 = vadd.f32 0.0, %v386
    %v388 = vpop.f32.mrf.mxu0
    %v389 = vadd.f32 0.0, %v388
    %390 = vmatmul.bf16.gmra.mxu0 %v302
    %v391 = vpop.f32.mrf.mxu0
    %v392 = vadd.f32 0.0, %v391
    %v393 = vpop.f32.mrf.mxu0
    %v394 = vadd.f32 0.0, %v393
    %395 = vmatmul.bf16.gmra.mxu0 %v305
    %v396 = vpop.f32.mrf.mxu0
    %v397 = vadd.f32 0.0, %v396
    %v398 = vpop.f32.mrf.mxu0
    %v399 = vadd.f32 0.0, %v398
    %400 = vmatmul.bf16.gmra.mxu0 %v308
    %v401 = vpop.f32.mrf.mxu0
    %v402 = vadd.f32 0.0, %v401
    %v403 = vpop.f32.mrf.mxu0
    %v404 = vadd.f32 0.0, %v403
    %405 = vdwg.mxu0
    %406 = vmatpush.bf16.msra.mxu0 0
    %407 = vmatpush.bf16.msra.mxu0 0
    %408 = vmatpush.bf16.msra.mxu0 0
    %409 = vmatpush.bf16.msra.mxu0 0
    %410 = vmatpush.bf16.msra.mxu0 0
    %411 = vmatpush.bf16.msra.mxu0 0
    %412 = vmatpush.bf16.msra.mxu0 0
    %413 = vmatpush.bf16.msra.mxu0 %v315
    %414 = vmatmul.bf16.gmra.mxu0 %v263
    %v415 = vpop.f32.mrf.mxu0
    %v416 = vadd.f32 0.0, %v415
    %v417 = vpop.f32.mrf.mxu0
    %v418 = vadd.f32 0.0, %v417
    %419 = vmatmul.bf16.gmra.mxu0 %v266
    %v420 = vpop.f32.mrf.mxu0
    %v421 = vadd.f32 0.0, %v420
    %v422 = vpop.f32.mrf.mxu0
    %v423 = vadd.f32 0.0, %v422
    %424 = vmatmul.bf16.gmra.mxu0 %v269
    %v425 = vpop.f32.mrf.mxu0
    %v426 = vadd.f32 0.0, %v425
    %v427 = vpop.f32.mrf.mxu0
    %v428 = vadd.f32 0.0, %v427
    %429 = vmatmul.bf16.gmra.mxu0 %v272
    %v430 = vpop.f32.mrf.mxu0
    %v431 = vadd.f32 0.0, %v430
    %v432 = vpop.f32.mrf.mxu0
    %v433 = vadd.f32 0.0, %v432
    %434 = vmatmul.bf16.gmra.mxu0 %v275
    %v435 = vpop.f32.mrf.mxu0
    %v436 = vadd.f32 0.0, %v435
    %v437 = vpop.f32.mrf.mxu0
    %v438 = vadd.f32 0.0, %v437
    %439 = vmatmul.bf16.gmra.mxu0 %v278
    %v440 = vpop.f32.mrf.mxu0
    %v441 = vadd.f32 0.0, %v440
    %v442 = vpop.f32.mrf.mxu0
    %v443 = vadd.f32 0.0, %v442
    %444 = vmatmul.bf16.gmra.mxu0 %v281
    %v445 = vpop.f32.mrf.mxu0
    %v446 = vadd.f32 0.0, %v445
    %v447 = vpop.f32.mrf.mxu0
    %v448 = vadd.f32 0.0, %v447
    %449 = vmatmul.bf16.gmra.mxu0 %v284
    %v450 = vpop.f32.mrf.mxu0
    %v451 = vadd.f32 0.0, %v450
    %v452 = vpop.f32.mrf.mxu0
    %v453 = vadd.f32 0.0, %v452
    %454 = vmatmul.bf16.gmra.mxu0 %v287
    %v455 = vpop.f32.mrf.mxu0
    %v456 = vadd.f32 0.0, %v455
    %v457 = vpop.f32.mrf.mxu0
    %v458 = vadd.f32 0.0, %v457
    %459 = vmatmul.bf16.gmra.mxu0 %v290
    %v460 = vpop.f32.mrf.mxu0
    %v461 = vadd.f32 0.0, %v460
    %v462 = vpop.f32.mrf.mxu0
    %v463 = vadd.f32 0.0, %v462
    %464 = vmatmul.bf16.gmra.mxu0 %v293
    %v465 = vpop.f32.mrf.mxu0
    %v466 = vadd.f32 0.0, %v465
    %v467 = vpop.f32.mrf.mxu0
    %v468 = vadd.f32 0.0, %v467
    %469 = vmatmul.bf16.gmra.mxu0 %v296
    %v470 = vpop.f32.mrf.mxu0
    %v471 = vadd.f32 0.0, %v470
    %v472 = vpop.f32.mrf.mxu0
    %v473 = vadd.f32 0.0, %v472
    %474 = vmatmul.bf16.gmra.mxu0 %v299
    %v475 = vpop.f32.mrf.mxu0
    %v476 = vadd.f32 0.0, %v475
    %v477 = vpop.f32.mrf.mxu0
    %v478 = vadd.f32 0.0, %v477
    %479 = vmatmul.bf16.gmra.mxu0 %v302
    %v480 = vpop.f32.mrf.mxu0
    %v481 = vadd.f32 0.0, %v480
    %v482 = vpop.f32.mrf.mxu0
    %v483 = vadd.f32 0.0, %v482
    %484 = vmatmul.bf16.gmra.mxu0 %v305
    %v485 = vpop.f32.mrf.mxu0
    %v486 = vadd.f32 0.0, %v485
    %v487 = vpop.f32.mrf.mxu0
    %v488 = vadd.f32 0.0, %v487
    %489 = vmatmul.bf16.gmra.mxu0 %v308
    %v490 = vpop.f32.mrf.mxu0
    %v491 = vadd.f32 0.0, %v490
    %v492 = vpop.f32.mrf.mxu0
    %v493 = vadd.f32 0.0, %v492
    %494 = vdwg.mxu0
    %v495 = vmul.f32 %v327, 0.0625
    %v496 = vmul.f32 %v416, 0.0625
    %v497 = vmul.f32 %v329, 0.0625
    %v498 = vmul.f32 %v418, 0.0625
    %v499 = vmul.f32 %v332, 0.0625
    %v500 = vmul.f32 %v421, 0.0625
    %v501 = vmul.f32 %v334, 0.0625
    %v502 = vmul.f32 %v423, 0.0625
    %v503 = vmul.f32 %v337, 0.0625
    %v504 = vmul.f32 %v426, 0.0625
    %v505 = vmul.f32 %v339, 0.0625
    %v506 = vmul.f32 %v428, 0.0625
    %v507 = vmul.f32 %v342, 0.0625
    %v508 = vmul.f32 %v431, 0.0625
    %v509 = vmul.f32 %v344, 0.0625
    %v510 = vmul.f32 %v433, 0.0625
    %v511 = vmul.f32 %v347, 0.0625
    %v512 = vmul.f32 %v436, 0.0625
    %v513 = vmul.f32 %v349, 0.0625
    %v514 = vmul.f32 %v438, 0.0625
    %v515 = vmul.f32 %v352, 0.0625
    %v516 = vmul.f32 %v441, 0.0625
    %v517 = vmul.f32 %v354, 0.0625
    %v518 = vmul.f32 %v443, 0.0625
    %v519 = vmul.f32 %v357, 0.0625
    %v520 = vmul.f32 %v446, 0.0625
    %v521 = vmul.f32 %v359, 0.0625
    %v522 = vmul.f32 %v448, 0.0625
    %v523 = vmul.f32 %v362, 0.0625
    %v524 = vmul.f32 %v451, 0.0625
    %v525 = vmul.f32 %v364, 0.0625
    %v526 = vmul.f32 %v453, 0.0625
    %v527 = vmul.f32 %v367, 0.0625
    %v528 = vmul.f32 %v456, 0.0625
    %v529 = vmul.f32 %v369, 0.0625
    %v530 = vmul.f32 %v458, 0.0625
    %v531 = vmul.f32 %v372, 0.0625
    %v532 = vmul.f32 %v461, 0.0625
    %v533 = vmul.f32 %v374, 0.0625
    %v534 = vmul.f32 %v463, 0.0625
    %v535 = vmul.f32 %v377, 0.0625
    %v536 = vmul.f32 %v466, 0.0625
    %v537 = vmul.f32 %v379, 0.0625
    %v538 = vmul.f32 %v468, 0.0625
    %v539 = vmul.f32 %v382, 0.0625
    %v540 = vmul.f32 %v471, 0.0625
    %v541 = vmul.f32 %v384, 0.0625
    %v542 = vmul.f32 %v473, 0.0625
    %v543 = vmul.f32 %v387, 0.0625
    %v544 = vmul.f32 %v476, 0.0625
    %v545 = vmul.f32 %v389, 0.0625
    %v546 = vmul.f32 %v478, 0.0625
    %v547 = vmul.f32 %v392, 0.0625
    %v548 = vmul.f32 %v481, 0.0625
    %v549 = vmul.f32 %v394, 0.0625
    %v550 = vmul.f32 %v483, 0.0625
    %v551 = vmul.f32 %v397, 0.0625
    %v552 = vmul.f32 %v486, 0.0625
    %v553 = vmul.f32 %v399, 0.0625
    %v554 = vmul.f32 %v488, 0.0625
    %v555 = vmul.f32 %v402, 0.0625
    %v556 = vmul.f32 %v491, 0.0625
    %v557 = vmul.f32 %v404, 0.0625
    %v558 = vmul.f32 %v493, 0.0625
    %v559 = vmax.f32 %v495, %v496
    %560 = vmax.xlane.f32.xlu0 %v559
    %v561 = vpop.xlane.xlu0 %560
    %v562 = vmax.f32 %v497, %v498
    %563 = vmax.xlane.f32.xlu0 %v562
    %v564 = vpop.xlane.xlu0 %563
    %v565 = vmax.f32 %v499, %v500
    %566 = vmax.xlane.f32.xlu0 %v565
    %v567 = vpop.xlane.xlu0 %566
    %v568 = vmax.f32 %v501, %v502
    %569 = vmax.xlane.f32.xlu0 %v568
    %v570 = vpop.xlane.xlu0 %569
    %v571 = vmax.f32 %v503, %v504
    %572 = vmax.xlane.f32.xlu0 %v571
    %v573 = vpop.xlane.xlu0 %572
    %v574 = vmax.f32 %v505, %v506
    %575 = vmax.xlane.f32.xlu0 %v574
    %v576 = vpop.xlane.xlu0 %575
    %v577 = vmax.f32 %v507, %v508
    %578 = vmax.xlane.f32.xlu0 %v577
    %v579 = vpop.xlane.xlu0 %578
    %v580 = vmax.f32 %v509, %v510
    %581 = vmax.xlane.f32.xlu0 %v580
    %v582 = vpop.xlane.xlu0 %581
    %v583 = vmax.f32 %v511, %v512
    %584 = vmax.xlane.f32.xlu0 %v583
    %v585 = vpop.xlane.xlu0 %584
    %v586 = vmax.f32 %v513, %v514
    %587 = vmax.xlane.f32.xlu0 %v586
    %v588 = vpop.xlane.xlu0 %587
    %v589 = vmax.f32 %v515, %v516
    %590 = vmax.xlane.f32.xlu0 %v589
    %v591 = vpop.xlane.xlu0 %590
    %v592 = vmax.f32 %v517, %v518
    %593 = vmax.xlane.f32.xlu0 %v592
    %v594 = vpop.xlane.xlu0 %593
    %v595 = vmax.f32 %v519, %v520
    %596 = vmax.xlane.f32.xlu0 %v595
    %v597 = vpop.xlane.xlu0 %596
    %v598 = vmax.f32 %v521, %v522
    %599 = vmax.xlane.f32.xlu0 %v598
    %v600 = vpop.xlane.xlu0 %599
    %v601 = vmax.f32 %v523, %v524
    %602 = vmax.xlane.f32.xlu0 %v601
    %v603 = vpop.xlane.xlu0 %602
    %v604 = vmax.f32 %v525, %v526
    %605 = vmax.xlane.f32.xlu0 %v604
    %v606 = vpop.xlane.xlu0 %605
    %v607 = vmax.f32 %v527, %v528
    %608 = vmax.xlane.f32.xlu0 %v607
    %v609 = vpop.xlane.xlu0 %608
    %v610 = vmax.f32 %v529, %v530
    %611 = vmax.xlane.f32.xlu0 %v610
    %v612 = vpop.xlane.xlu0 %611
    %v613 = vmax.f32 %v531, %v532
    %614 = vmax.xlane.f32.xlu0 %v613
    %v615 = vpop.xlane.xlu0 %614
    %v616 = vmax.f32 %v533, %v534
    %617 = vmax.xlane.f32.xlu0 %v616
    %v618 = vpop.xlane.xlu0 %617
    %v619 = vmax.f32 %v535, %v536
    %620 = vmax.xlane.f32.xlu0 %v619
    %v621 = vpop.xlane.xlu0 %620
    %v622 = vmax.f32 %v537, %v538
    %623 = vmax.xlane.f32.xlu0 %v622
    %v624 = vpop.xlane.xlu0 %623
    %v625 = vmax.f32 %v539, %v540
    %626 = vmax.xlane.f32.xlu0 %v625
    %v627 = vpop.xlane.xlu0 %626
    %v628 = vmax.f32 %v541, %v542
    %629 = vmax.xlane.f32.xlu0 %v628
    %v630 = vpop.xlane.xlu0 %629
    %v631 = vmax.f32 %v543, %v544
    %632 = vmax.xlane.f32.xlu0 %v631
    %v633 = vpop.xlane.xlu0 %632
    %v634 = vmax.f32 %v545, %v546
    %635 = vmax.xlane.f32.xlu0 %v634
    %v636 = vpop.xlane.xlu0 %635
    %v637 = vmax.f32 %v547, %v548
    %638 = vmax.xlane.f32.xlu0 %v637
    %v639 = vpop.xlane.xlu0 %638
    %v640 = vmax.f32 %v549, %v550
    %641 = vmax.xlane.f32.xlu0 %v640
    %v642 = vpop.xlane.xlu0 %641
    %v643 = vmax.f32 %v551, %v552
    %644 = vmax.xlane.f32.xlu0 %v643
    %v645 = vpop.xlane.xlu0 %644
    %v646 = vmax.f32 %v553, %v554
    %647 = vmax.xlane.f32.xlu0 %v646
    %v648 = vpop.xlane.xlu0 %647
    %v649 = vmax.f32 %v555, %v556
    %650 = vmax.xlane.f32.xlu0 %v649
    %v651 = vpop.xlane.xlu0 %650
    %v652 = vmax.f32 %v557, %v558
    %653 = vmax.xlane.f32.xlu0 %v652
    %v654 = vpop.xlane.xlu0 %653
    %v655 = vsub.f32 %v495, %v561
    %v656 = vsub.f32 %v496, %v561
    %v657 = vsub.f32 %v497, %v564
    %v658 = vsub.f32 %v498, %v564
    %v659 = vsub.f32 %v499, %v567
    %v660 = vsub.f32 %v500, %v567
    %v661 = vsub.f32 %v501, %v570
    %v662 = vsub.f32 %v502, %v570
    %v663 = vsub.f32 %v503, %v573
    %v664 = vsub.f32 %v504, %v573
    %v665 = vsub.f32 %v505, %v576
    %v666 = vsub.f32 %v506, %v576
    %v667 = vsub.f32 %v507, %v579
    %v668 = vsub.f32 %v508, %v579
    %v669 = vsub.f32 %v509, %v582
    %v670 = vsub.f32 %v510, %v582
    %v671 = vsub.f32 %v511, %v585
    %v672 = vsub.f32 %v512, %v585
    %v673 = vsub.f32 %v513, %v588
    %v674 = vsub.f32 %v514, %v588
    %v675 = vsub.f32 %v515, %v591
    %v676 = vsub.f32 %v516, %v591
    %v677 = vsub.f32 %v517, %v594
    %v678 = vsub.f32 %v518, %v594
    %v679 = vsub.f32 %v519, %v597
    %v680 = vsub.f32 %v520, %v597
    %v681 = vsub.f32 %v521, %v600
    %v682 = vsub.f32 %v522, %v600
    %v683 = vsub.f32 %v523, %v603
    %v684 = vsub.f32 %v524, %v603
    %v685 = vsub.f32 %v525, %v606
    %v686 = vsub.f32 %v526, %v606
    %v687 = vsub.f32 %v527, %v609
    %v688 = vsub.f32 %v528, %v609
    %v689 = vsub.f32 %v529, %v612
    %v690 = vsub.f32 %v530, %v612
    %v691 = vsub.f32 %v531, %v615
    %v692 = vsub.f32 %v532, %v615
    %v693 = vsub.f32 %v533, %v618
    %v694 = vsub.f32 %v534, %v618
    %v695 = vsub.f32 %v535, %v621
    %v696 = vsub.f32 %v536, %v621
    %v697 = vsub.f32 %v537, %v624
    %v698 = vsub.f32 %v538, %v624
    %v699 = vsub.f32 %v539, %v627
    %v700 = vsub.f32 %v540, %v627
    %v701 = vsub.f32 %v541, %v630
    %v702 = vsub.f32 %v542, %v630
    %v703 = vsub.f32 %v543, %v633
    %v704 = vsub.f32 %v544, %v633
    %v705 = vsub.f32 %v545, %v636
    %v706 = vsub.f32 %v546, %v636
    %v707 = vsub.f32 %v547, %v639
    %v708 = vsub.f32 %v548, %v639
    %v709 = vsub.f32 %v549, %v642
    %v710 = vsub.f32 %v550, %v642
    %v711 = vsub.f32 %v551, %v645
    %v712 = vsub.f32 %v552, %v645
    %v713 = vsub.f32 %v553, %v648
    %v714 = vsub.f32 %v554, %v648
    %v715 = vsub.f32 %v555, %v651
    %v716 = vsub.f32 %v556, %v651
    %v717 = vsub.f32 %v557, %v654
    %v718 = vsub.f32 %v558, %v654
    %v719 = vmul.f32 %v655, 1.442695
    %v720 = vpow.pop %v719
    %v721 = vmul.f32 %v656, 1.442695
    %v722 = vpow.pop %v721
    %v723 = vmul.f32 %v657, 1.442695
    %v724 = vpow.pop %v723
    %v725 = vmul.f32 %v658, 1.442695
    %v726 = vpow.pop %v725
    %v727 = vmul.f32 %v659, 1.442695
    %v728 = vpow.pop %v727
    %v729 = vmul.f32 %v660, 1.442695
    %v730 = vpow.pop %v729
    %v731 = vmul.f32 %v661, 1.442695
    %v732 = vpow.pop %v731
    %v733 = vmul.f32 %v662, 1.442695
    %v734 = vpow.pop %v733
    %v735 = vmul.f32 %v663, 1.442695
    %v736 = vpow.pop %v735
    %v737 = vmul.f32 %v664, 1.442695
    %v738 = vpow.pop %v737
    %v739 = vmul.f32 %v665, 1.442695
    %v740 = vpow.pop %v739
    %v741 = vmul.f32 %v666, 1.442695
    %v742 = vpow.pop %v741
    %v743 = vmul.f32 %v667, 1.442695
    %v744 = vpow.pop %v743
    %v745 = vmul.f32 %v668, 1.442695
    %v746 = vpow.pop %v745
    %v747 = vmul.f32 %v669, 1.442695
    %v748 = vpow.pop %v747
    %v749 = vmul.f32 %v670, 1.442695
    %v750 = vpow.pop %v749
    %v751 = vmul.f32 %v671, 1.442695
    %v752 = vpow.pop %v751
    %v753 = vmul.f32 %v672, 1.442695
    %v754 = vpow.pop %v753
    %v755 = vmul.f32 %v673, 1.442695
    %v756 = vpow.pop %v755
    %v757 = vmul.f32 %v674, 1.442695
    %v758 = vpow.pop %v757
    %v759 = vmul.f32 %v675, 1.442695
    %v760 = vpow.pop %v759
    %v761 = vmul.f32 %v676, 1.442695
    %v762 = vpow.pop %v761
    %v763 = vmul.f32 %v677, 1.442695
    %v764 = vpow.pop %v763
    %v765 = vmul.f32 %v678, 1.442695
    %v766 = vpow.pop %v765
    %v767 = vmul.f32 %v679, 1.442695
    %v768 = vpow.pop %v767
    %v769 = vmul.f32 %v680, 1.442695
    %v770 = vpow.pop %v769
    %v771 = vmul.f32 %v681, 1.442695
    %v772 = vpow.pop %v771
    %v773 = vmul.f32 %v682, 1.442695
    %v774 = vpow.pop %v773
    %v775 = vmul.f32 %v683, 1.442695
    %v776 = vpow.pop %v775
    %v777 = vmul.f32 %v684, 1.442695
    %v778 = vpow.pop %v777
    %v779 = vmul.f32 %v685, 1.442695
    %v780 = vpow.pop %v779
    %v781 = vmul.f32 %v686, 1.442695
    %v782 = vpow.pop %v781
    %v783 = vmul.f32 %v687, 1.442695
    %v784 = vpow.pop %v783
    %v785 = vmul.f32 %v688, 1.442695
    %v786 = vpow.pop %v785
    %v787 = vmul.f32 %v689, 1.442695
    %v788 = vpow.pop %v787
    %v789 = vmul.f32 %v690, 1.442695
    %v790 = vpow.pop %v789
    %v791 = vmul.f32 %v691, 1.442695
    %v792 = vpow.pop %v791
    %v793 = vmul.f32 %v692, 1.442695
    %v794 = vpow.pop %v793
    %v795 = vmul.f32 %v693, 1.442695
    %v796 = vpow.pop %v795
    %v797 = vmul.f32 %v694, 1.442695
    %v798 = vpow.pop %v797
    %v799 = vmul.f32 %v695, 1.442695
    %v800 = vpow.pop %v799
    %v801 = vmul.f32 %v696, 1.442695
    %v802 = vpow.pop %v801
    %v803 = vmul.f32 %v697, 1.442695
    %v804 = vpow.pop %v803
    %v805 = vmul.f32 %v698, 1.442695
    %v806 = vpow.pop %v805
    %v807 = vmul.f32 %v699, 1.442695
    %v808 = vpow.pop %v807
    %v809 = vmul.f32 %v700, 1.442695
    %v810 = vpow.pop %v809
    %v811 = vmul.f32 %v701, 1.442695
    %v812 = vpow.pop %v811
    %v813 = vmul.f32 %v702, 1.442695
    %v814 = vpow.pop %v813
    %v815 = vmul.f32 %v703, 1.442695
    %v816 = vpow.pop %v815
    %v817 = vmul.f32 %v704, 1.442695
    %v818 = vpow.pop %v817
    %v819 = vmul.f32 %v705, 1.442695
    %v820 = vpow.pop %v819
    %v821 = vmul.f32 %v706, 1.442695
    %v822 = vpow.pop %v821
    %v823 = vmul.f32 %v707, 1.442695
    %v824 = vpow.pop %v823
    %v825 = vmul.f32 %v708, 1.442695
    %v826 = vpow.pop %v825
    %v827 = vmul.f32 %v709, 1.442695
    %v828 = vpow.pop %v827
    %v829 = vmul.f32 %v710, 1.442695
    %v830 = vpow.pop %v829
    %v831 = vmul.f32 %v711, 1.442695
    %v832 = vpow.pop %v831
    %v833 = vmul.f32 %v712, 1.442695
    %v834 = vpow.pop %v833
    %v835 = vmul.f32 %v713, 1.442695
    %v836 = vpow.pop %v835
    %v837 = vmul.f32 %v714, 1.442695
    %v838 = vpow.pop %v837
    %v839 = vmul.f32 %v715, 1.442695
    %v840 = vpow.pop %v839
    %v841 = vmul.f32 %v716, 1.442695
    %v842 = vpow.pop %v841
    %v843 = vmul.f32 %v717, 1.442695
    %v844 = vpow.pop %v843
    %v845 = vmul.f32 %v718, 1.442695
    %v846 = vpow.pop %v845
    %v847 = vadd.f32 %v720, %v722
    %848 = vadd.xlane.f32.xlu0 %v847
    %v849 = vpop.xlane.xlu0 %848
    %v850 = vadd.f32 %v724, %v726
    %851 = vadd.xlane.f32.xlu0 %v850
    %v852 = vpop.xlane.xlu0 %851
    %v853 = vadd.f32 %v728, %v730
    %854 = vadd.xlane.f32.xlu0 %v853
    %v855 = vpop.xlane.xlu0 %854
    %v856 = vadd.f32 %v732, %v734
    %857 = vadd.xlane.f32.xlu0 %v856
    %v858 = vpop.xlane.xlu0 %857
    %v859 = vadd.f32 %v736, %v738
    %860 = vadd.xlane.f32.xlu0 %v859
    %v861 = vpop.xlane.xlu0 %860
    %v862 = vadd.f32 %v740, %v742
    %863 = vadd.xlane.f32.xlu0 %v862
    %v864 = vpop.xlane.xlu0 %863
    %v865 = vadd.f32 %v744, %v746
    %866 = vadd.xlane.f32.xlu0 %v865
    %v867 = vpop.xlane.xlu0 %866
    %v868 = vadd.f32 %v748, %v750
    %869 = vadd.xlane.f32.xlu0 %v868
    %v870 = vpop.xlane.xlu0 %869
    %v871 = vadd.f32 %v752, %v754
    %872 = vadd.xlane.f32.xlu0 %v871
    %v873 = vpop.xlane.xlu0 %872
    %v874 = vadd.f32 %v756, %v758
    %875 = vadd.xlane.f32.xlu0 %v874
    %v876 = vpop.xlane.xlu0 %875
    %v877 = vadd.f32 %v760, %v762
    %878 = vadd.xlane.f32.xlu0 %v877
    %v879 = vpop.xlane.xlu0 %878
    %v880 = vadd.f32 %v764, %v766
    %881 = vadd.xlane.f32.xlu0 %v880
    %v882 = vpop.xlane.xlu0 %881
    %v883 = vadd.f32 %v768, %v770
    %884 = vadd.xlane.f32.xlu0 %v883
    %v885 = vpop.xlane.xlu0 %884
    %v886 = vadd.f32 %v772, %v774
    %887 = vadd.xlane.f32.xlu0 %v886
    %v888 = vpop.xlane.xlu0 %887
    %v889 = vadd.f32 %v776, %v778
    %890 = vadd.xlane.f32.xlu0 %v889
    %v891 = vpop.xlane.xlu0 %890
    %v892 = vadd.f32 %v780, %v782
    %893 = vadd.xlane.f32.xlu0 %v892
    %v894 = vpop.xlane.xlu0 %893
    %v895 = vadd.f32 %v784, %v786
    %896 = vadd.xlane.f32.xlu0 %v895
    %v897 = vpop.xlane.xlu0 %896
    %v898 = vadd.f32 %v788, %v790
    %899 = vadd.xlane.f32.xlu0 %v898
    %v900 = vpop.xlane.xlu0 %899
    %v901 = vadd.f32 %v792, %v794
    %902 = vadd.xlane.f32.xlu0 %v901
    %v903 = vpop.xlane.xlu0 %902
    %v904 = vadd.f32 %v796, %v798
    %905 = vadd.xlane.f32.xlu0 %v904
    %v906 = vpop.xlane.xlu0 %905
    %v907 = vadd.f32 %v800, %v802
    %908 = vadd.xlane.f32.xlu0 %v907
    %v909 = vpop.xlane.xlu0 %908
    %v910 = vadd.f32 %v804, %v806
    %911 = vadd.xlane.f32.xlu0 %v910
    %v912 = vpop.xlane.xlu0 %911
    %v913 = vadd.f32 %v808, %v810
    %914 = vadd.xlane.f32.xlu0 %v913
    %v915 = vpop.xlane.xlu0 %914
    %v916 = vadd.f32 %v812, %v814
    %917 = vadd.xlane.f32.xlu0 %v916
    %v918 = vpop.xlane.xlu0 %917
    %v919 = vadd.f32 %v816, %v818
    %920 = vadd.xlane.f32.xlu0 %v919
    %v921 = vpop.xlane.xlu0 %920
    %v922 = vadd.f32 %v820, %v822
    %923 = vadd.xlane.f32.xlu0 %v922
    %v924 = vpop.xlane.xlu0 %923
    %v925 = vadd.f32 %v824, %v826
    %926 = vadd.xlane.f32.xlu0 %v925
    %v927 = vpop.xlane.xlu0 %926
    %v928 = vadd.f32 %v828, %v830
    %929 = vadd.xlane.f32.xlu0 %v928
    %v930 = vpop.xlane.xlu0 %929
    %v931 = vadd.f32 %v832, %v834
    %932 = vadd.xlane.f32.xlu0 %v931
    %v933 = vpop.xlane.xlu0 %932
    %v934 = vadd.f32 %v836, %v838
    %935 = vadd.xlane.f32.xlu0 %v934
    %v936 = vpop.xlane.xlu0 %935
    %v937 = vadd.f32 %v840, %v842
    %938 = vadd.xlane.f32.xlu0 %v937
    %v939 = vpop.xlane.xlu0 %938
    %v940 = vadd.f32 %v844, %v846
    %941 = vadd.xlane.f32.xlu0 %v940
    %v942 = vpop.xlane.xlu0 %941
    %v943 = vrcp.pop %v849
    %v944 = vrcp.pop %v852
    %v945 = vrcp.pop %v855
    %v946 = vrcp.pop %v858
    %v947 = vrcp.pop %v861
    %v948 = vrcp.pop %v864
    %v949 = vrcp.pop %v867
    %v950 = vrcp.pop %v870
    %v951 = vrcp.pop %v873
    %v952 = vrcp.pop %v876
    %v953 = vrcp.pop %v879
    %v954 = vrcp.pop %v882
    %v955 = vrcp.pop %v885
    %v956 = vrcp.pop %v888
    %v957 = vrcp.pop %v891
    %v958 = vrcp.pop %v894
    %v959 = vrcp.pop %v897
    %v960 = vrcp.pop %v900
    %v961 = vrcp.pop %v903
    %v962 = vrcp.pop %v906
    %v963 = vrcp.pop %v909
    %v964 = vrcp.pop %v912
    %v965 = vrcp.pop %v915
    %v966 = vrcp.pop %v918
    %v967 = vrcp.pop %v921
    %v968 = vrcp.pop %v924
    %v969 = vrcp.pop %v927
    %v970 = vrcp.pop %v930
    %v971 = vrcp.pop %v933
    %v972 = vrcp.pop %v936
    %v973 = vrcp.pop %v939
    %v974 = vrcp.pop %v942
    %v975 = vmul.f32 %v720, %v943
    %v976 = vmul.f32 %v722, %v943
    %v977 = vmul.f32 %v724, %v944
    %v978 = vmul.f32 %v726, %v944
    %v979 = vmul.f32 %v728, %v945
    %v980 = vmul.f32 %v730, %v945
    %v981 = vmul.f32 %v732, %v946
    %v982 = vmul.f32 %v734, %v946
    %v983 = vmul.f32 %v736, %v947
    %v984 = vmul.f32 %v738, %v947
    %v985 = vmul.f32 %v740, %v948
    %v986 = vmul.f32 %v742, %v948
    %v987 = vmul.f32 %v744, %v949
    %v988 = vmul.f32 %v746, %v949
    %v989 = vmul.f32 %v748, %v950
    %v990 = vmul.f32 %v750, %v950
    %v991 = vmul.f32 %v752, %v951
    %v992 = vmul.f32 %v754, %v951
    %v993 = vmul.f32 %v756, %v952
    %v994 = vmul.f32 %v758, %v952
    %v995 = vmul.f32 %v760, %v953
    %v996 = vmul.f32 %v762, %v953
    %v997 = vmul.f32 %v764, %v954
    %v998 = vmul.f32 %v766, %v954
    %v999 = vmul.f32 %v768, %v955
    %v1000 = vmul.f32 %v770, %v955
    %v1001 = vmul.f32 %v772, %v956
    %v1002 = vmul.f32 %v774, %v956
    %v1003 = vmul.f32 %v776, %v957
    %v1004 = vmul.f32 %v778, %v957
    %v1005 = vmul.f32 %v780, %v958
    %v1006 = vmul.f32 %v782, %v958
    %v1007 = vmul.f32 %v784, %v959
    %v1008 = vmul.f32 %v786, %v959
    %v1009 = vmul.f32 %v788, %v960
    %v1010 = vmul.f32 %v790, %v960
    %v1011 = vmul.f32 %v792, %v961
    %v1012 = vmul.f32 %v794, %v961
    %v1013 = vmul.f32 %v796, %v962
    %v1014 = vmul.f32 %v798, %v962
    %v1015 = vmul.f32 %v800, %v963
    %v1016 = vmul.f32 %v802, %v963
    %v1017 = vmul.f32 %v804, %v964
    %v1018 = vmul.f32 %v806, %v964
    %v1019 = vmul.f32 %v808, %v965
    %v1020 = vmul.f32 %v810, %v965
    %v1021 = vmul.f32 %v812, %v966
    %v1022 = vmul.f32 %v814, %v966
    %v1023 = vmul.f32 %v816, %v967
    %v1024 = vmul.f32 %v818, %v967
    %v1025 = vmul.f32 %v820, %v968
    %v1026 = vmul.f32 %v822, %v968
    %v1027 = vmul.f32 %v824, %v969
    %v1028 = vmul.f32 %v826, %v969
    %v1029 = vmul.f32 %v828, %v970
    %v1030 = vmul.f32 %v830, %v970
    %v1031 = vmul.f32 %v832, %v971
    %v1032 = vmul.f32 %v834, %v971
    %v1033 = vmul.f32 %v836, %v972
    %v1034 = vmul.f32 %v838, %v972
    %v1035 = vmul.f32 %v840, %v973
    %v1036 = vmul.f32 %v842, %v973
    %v1037 = vmul.f32 %v844, %v974
    %v1038 = vmul.f32 %v846, %v974
    %v1039 = vpack.c.bf16 %v977, %v975
    %v1040 = vpack.c.bf16 %v978, %v976
    %v1041 = vpack.c.bf16 %v981, %v979
    %v1042 = vpack.c.bf16 %v982, %v980
    %v1043 = vpack.c.bf16 %v985, %v983
    %v1044 = vpack.c.bf16 %v986, %v984
    %v1045 = vpack.c.bf16 %v989, %v987
    %v1046 = vpack.c.bf16 %v990, %v988
    %v1047 = vpack.c.bf16 %v993, %v991
    %v1048 = vpack.c.bf16 %v994, %v992
    %v1049 = vpack.c.bf16 %v997, %v995
    %v1050 = vpack.c.bf16 %v998, %v996
    %v1051 = vpack.c.bf16 %v1001, %v999
    %v1052 = vpack.c.bf16 %v1002, %v1000
    %v1053 = vpack.c.bf16 %v1005, %v1003
    %v1054 = vpack.c.bf16 %v1006, %v1004
    %v1055 = vpack.c.bf16 %v1009, %v1007
    %v1056 = vpack.c.bf16 %v1010, %v1008
    %v1057 = vpack.c.bf16 %v1013, %v1011
    %v1058 = vpack.c.bf16 %v1014, %v1012
    %v1059 = vpack.c.bf16 %v1017, %v1015
    %v1060 = vpack.c.bf16 %v1018, %v1016
    %v1061 = vpack.c.bf16 %v1021, %v1019
    %v1062 = vpack.c.bf16 %v1022, %v1020
    %v1063 = vpack.c.bf16 %v1025, %v1023
    %v1064 = vpack.c.bf16 %v1026, %v1024
    %v1065 = vpack.c.bf16 %v1029, %v1027
    %v1066 = vpack.c.bf16 %v1030, %v1028
    %v1067 = vpack.c.bf16 %v1033, %v1031
    %v1068 = vpack.c.bf16 %v1034, %v1032
    %v1069 = vpack.c.bf16 %v1037, %v1035
    %v1070 = vpack.c.bf16 %v1038, %v1036
    %v1071 = vpack.c.bf16 %v231, %v229
    %v1072 = vpack.c.bf16 %v232, %v230
    %v1073 = vld [vmem:[#allocation5] sm:$0xff]
    %v1074 = vld [vmem:[#allocation5 + $0x8] sm:$0xff]
    %v1075 = vld [vmem:[#allocation5 + $0x10] sm:$0xff]
    %v1076 = vld [vmem:[#allocation5 + $0x18] sm:$0xff]
    %v1077 = vld [vmem:[#allocation5 + $0x20] sm:$0xff]
    %v1078 = vld [vmem:[#allocation5 + $0x28] sm:$0xff]
    %v1079 = vld [vmem:[#allocation5 + $0x30] sm:$0xff]
    %v1080 = vld [vmem:[#allocation5 + $0x38] sm:$0xff]
    %v1081 = vld [vmem:[#allocation5 + $0x40] sm:$0xff]
    %v1082 = vld [vmem:[#allocation5 + $0x48] sm:$0xff]
    %v1083 = vld [vmem:[#allocation5 + $0x50] sm:$0xff]
    %v1084 = vld [vmem:[#allocation5 + $0x58] sm:$0xff]
    %v1085 = vld [vmem:[#allocation5 + $0x60] sm:$0xff]
    %v1086 = vld [vmem:[#allocation5 + $0x68] sm:$0xff]
    %v1087 = vld [vmem:[#allocation5 + $0x70] sm:$0xff]
    %v1088 = vld [vmem:[#allocation5 + $0x78] sm:$0xff]
    %v1089 = vld [vmem:[#allocation5 + $0x80] sm:$0xff]
    %v1090 = vld [vmem:[#allocation5 + $0x88] sm:$0xff]
    %v1091 = vld [vmem:[#allocation5 + $0x90] sm:$0xff]
    %v1092 = vld [vmem:[#allocation5 + $0x98] sm:$0xff]
    %v1093 = vld [vmem:[#allocation5 + $0xa0] sm:$0xff]
    %v1094 = vld [vmem:[#allocation5 + $0xa8] sm:$0xff]
    %v1095 = vld [vmem:[#allocation5 + $0xb0] sm:$0xff]
    %v1096 = vld [vmem:[#allocation5 + $0xb8] sm:$0xff]
    %v1097 = vld [vmem:[#allocation5 + $0xc0] sm:$0xff]
    %v1098 = vld [vmem:[#allocation5 + $0xc8] sm:$0xff]
    %v1099 = vld [vmem:[#allocation5 + $0xd0] sm:$0xff]
    %v1100 = vld [vmem:[#allocation5 + $0xd8] sm:$0xff]
    %v1101 = vld [vmem:[#allocation5 + $0xe0] sm:$0xff]
    %v1102 = vld [vmem:[#allocation5 + $0xe8] sm:$0xff]
    %v1103 = vld [vmem:[#allocation5 + $0xf0] sm:$0xff]
    %v1104 = vld [vmem:[#allocation5 + $0xf8] sm:$0xff]
    %v1105 = vld [vmem:[#allocation5 + $0x100] sm:$0xff]
    %v1106 = vld [vmem:[#allocation5 + $0x108] sm:$0xff]
    %v1107 = vld [vmem:[#allocation5 + $0x110] sm:$0xff]
    %v1108 = vld [vmem:[#allocation5 + $0x118] sm:$0xff]
    %v1109 = vld [vmem:[#allocation5 + $0x120] sm:$0xff]
    %v1110 = vld [vmem:[#allocation5 + $0x128] sm:$0xff]
    %v1111 = vld [vmem:[#allocation5 + $0x130] sm:$0xff]
    %v1112 = vld [vmem:[#allocation5 + $0x138] sm:$0xff]
    %v1113 = vld [vmem:[#allocation5 + $0x140] sm:$0xff]
    %v1114 = vld [vmem:[#allocation5 + $0x148] sm:$0xff]
    %v1115 = vld [vmem:[#allocation5 + $0x150] sm:$0xff]
    %v1116 = vld [vmem:[#allocation5 + $0x158] sm:$0xff]
    %v1117 = vld [vmem:[#allocation5 + $0x160] sm:$0xff]
    %v1118 = vld [vmem:[#allocation5 + $0x168] sm:$0xff]
    %v1119 = vld [vmem:[#allocation5 + $0x170] sm:$0xff]
    %v1120 = vld [vmem:[#allocation5 + $0x178] sm:$0xff]
    %v1121 = vld [vmem:[#allocation5 + $0x180] sm:$0xff]
    %v1122 = vld [vmem:[#allocation5 + $0x188] sm:$0xff]
    %v1123 = vld [vmem:[#allocation5 + $0x190] sm:$0xff]
    %v1124 = vld [vmem:[#allocation5 + $0x198] sm:$0xff]
    %v1125 = vld [vmem:[#allocation5 + $0x1a0] sm:$0xff]
    %v1126 = vld [vmem:[#allocation5 + $0x1a8] sm:$0xff]
    %v1127 = vld [vmem:[#allocation5 + $0x1b0] sm:$0xff]
    %v1128 = vld [vmem:[#allocation5 + $0x1b8] sm:$0xff]
    %v1129 = vld [vmem:[#allocation5 + $0x1c0] sm:$0xff]
    %v1130 = vld [vmem:[#allocation5 + $0x1c8] sm:$0xff]
    %v1131 = vld [vmem:[#allocation5 + $0x1d0] sm:$0xff]
    %v1132 = vld [vmem:[#allocation5 + $0x1d8] sm:$0xff]
    %v1133 = vld [vmem:[#allocation5 + $0x1e0] sm:$0xff]
    %v1134 = vld [vmem:[#allocation5 + $0x1e8] sm:$0xff]
    %v1135 = vld [vmem:[#allocation5 + $0x1f0] sm:$0xff]
    %v1136 = vld [vmem:[#allocation5 + $0x1f8] sm:$0xff]
    %v1201 = vunpack.c.l.b16 %v1073
    %v1202 = vunpack.c.h.b16 %v1073
    %v1203 = vunpack.c.l.b16 %v1074
    %v1204 = vunpack.c.h.b16 %v1074
    %v1205 = vunpack.c.l.b16 %v1075
    %v1206 = vunpack.c.h.b16 %v1075
    %v1207 = vunpack.c.l.b16 %v1076
    %v1208 = vunpack.c.h.b16 %v1076
    %v1209 = vunpack.c.l.b16 %v1077
    %v1210 = vunpack.c.h.b16 %v1077
    %v1211 = vunpack.c.l.b16 %v1078
    %v1212 = vunpack.c.h.b16 %v1078
    %v1213 = vunpack.c.l.b16 %v1079
    %v1214 = vunpack.c.h.b16 %v1079
    %v1215 = vunpack.c.l.b16 %v1080
    %v1216 = vunpack.c.h.b16 %v1080
    %v1217 = vunpack.c.l.b16 %v1081
    %v1218 = vunpack.c.h.b16 %v1081
    %v1219 = vunpack.c.l.b16 %v1082
    %v1220 = vunpack.c.h.b16 %v1082
    %v1221 = vunpack.c.l.b16 %v1083
    %v1222 = vunpack.c.h.b16 %v1083
    %v1223 = vunpack.c.l.b16 %v1084
    %v1224 = vunpack.c.h.b16 %v1084
    %v1225 = vunpack.c.l.b16 %v1085
    %v1226 = vunpack.c.h.b16 %v1085
    %v1227 = vunpack.c.l.b16 %v1086
    %v1228 = vunpack.c.h.b16 %v1086
    %v1229 = vunpack.c.l.b16 %v1087
    %v1230 = vunpack.c.h.b16 %v1087
    %v1231 = vunpack.c.l.b16 %v1088
    %v1232 = vunpack.c.h.b16 %v1088
    %v1233 = vunpack.c.l.b16 %v1089
    %v1234 = vunpack.c.h.b16 %v1089
    %v1235 = vunpack.c.l.b16 %v1090
    %v1236 = vunpack.c.h.b16 %v1090
    %v1237 = vunpack.c.l.b16 %v1091
    %v1238 = vunpack.c.h.b16 %v1091
    %v1239 = vunpack.c.l.b16 %v1092
    %v1240 = vunpack.c.h.b16 %v1092
    %v1241 = vunpack.c.l.b16 %v1093
    %v1242 = vunpack.c.h.b16 %v1093
    %v1243 = vunpack.c.l.b16 %v1094
    %v1244 = vunpack.c.h.b16 %v1094
    %v1245 = vunpack.c.l.b16 %v1095
    %v1246 = vunpack.c.h.b16 %v1095
    %v1247 = vunpack.c.l.b16 %v1096
    %v1248 = vunpack.c.h.b16 %v1096
    %v1249 = vunpack.c.l.b16 %v1097
    %v1250 = vunpack.c.h.b16 %v1097
    %v1251 = vunpack.c.l.b16 %v1098
    %v1252 = vunpack.c.h.b16 %v1098
    %v1253 = vunpack.c.l.b16 %v1099
    %v1254 = vunpack.c.h.b16 %v1099
    %v1255 = vunpack.c.l.b16 %v1100
    %v1256 = vunpack.c.h.b16 %v1100
    %v1257 = vunpack.c.l.b16 %v1101
    %v1258 = vunpack.c.h.b16 %v1101
    %v1259 = vunpack.c.l.b16 %v1102
    %v1260 = vunpack.c.h.b16 %v1102
    %v1261 = vunpack.c.l.b16 %v1103
    %v1262 = vunpack.c.h.b16 %v1103
    %v1263 = vunpack.c.l.b16 %v1104
    %v1264 = vunpack.c.h.b16 %v1104
    %v1265 = vunpack.c.l.b16 %v1105
    %v1266 = vunpack.c.h.b16 %v1105
    %v1267 = vunpack.c.l.b16 %v1106
    %v1268 = vunpack.c.h.b16 %v1106
    %v1269 = vunpack.c.l.b16 %v1107
    %v1270 = vunpack.c.h.b16 %v1107
    %v1271 = vunpack.c.l.b16 %v1108
    %v1272 = vunpack.c.h.b16 %v1108
    %v1273 = vunpack.c.l.b16 %v1109
    %v1274 = vunpack.c.h.b16 %v1109
    %v1275 = vunpack.c.l.b16 %v1110
    %v1276 = vunpack.c.h.b16 %v1110
    %v1277 = vunpack.c.l.b16 %v1111
    %v1278 = vunpack.c.h.b16 %v1111
    %v1279 = vunpack.c.l.b16 %v1112
    %v1280 = vunpack.c.h.b16 %v1112
    %v1281 = vunpack.c.l.b16 %v1113
    %v1282 = vunpack.c.h.b16 %v1113
    %v1283 = vunpack.c.l.b16 %v1114
    %v1284 = vunpack.c.h.b16 %v1114
    %v1285 = vunpack.c.l.b16 %v1115
    %v1286 = vunpack.c.h.b16 %v1115
    %v1287 = vunpack.c.l.b16 %v1116
    %v1288 = vunpack.c.h.b16 %v1116
    %v1289 = vunpack.c.l.b16 %v1117
    %v1290 = vunpack.c.h.b16 %v1117
    %v1291 = vunpack.c.l.b16 %v1118
    %v1292 = vunpack.c.h.b16 %v1118
    %v1293 = vunpack.c.l.b16 %v1119
    %v1294 = vunpack.c.h.b16 %v1119
    %v1295 = vunpack.c.l.b16 %v1120
    %v1296 = vunpack.c.h.b16 %v1120
    %v1297 = vunpack.c.l.b16 %v1121
    %v1298 = vunpack.c.h.b16 %v1121
    %v1299 = vunpack.c.l.b16 %v1122
    %v1300 = vunpack.c.h.b16 %v1122
    %v1301 = vunpack.c.l.b16 %v1123
    %v1302 = vunpack.c.h.b16 %v1123
    %v1303 = vunpack.c.l.b16 %v1124
    %v1304 = vunpack.c.h.b16 %v1124
    %v1305 = vunpack.c.l.b16 %v1125
    %v1306 = vunpack.c.h.b16 %v1125
    %v1307 = vunpack.c.l.b16 %v1126
    %v1308 = vunpack.c.h.b16 %v1126
    %v1309 = vunpack.c.l.b16 %v1127
    %v1310 = vunpack.c.h.b16 %v1127
    %v1311 = vunpack.c.l.b16 %v1128
    %v1312 = vunpack.c.h.b16 %v1128
    %v1313 = vunpack.c.l.b16 %v1129
    %v1314 = vunpack.c.h.b16 %v1129
    %v1315 = vunpack.c.l.b16 %v1130
    %v1316 = vunpack.c.h.b16 %v1130
    %v1317 = vunpack.c.l.b16 %v1131
    %v1318 = vunpack.c.h.b16 %v1131
    %v1319 = vunpack.c.l.b16 %v1132
    %v1320 = vunpack.c.h.b16 %v1132
    %v1321 = vunpack.c.l.b16 %v1133
    %v1322 = vunpack.c.h.b16 %v1133
    %v1323 = vunpack.c.l.b16 %v1134
    %v1324 = vunpack.c.h.b16 %v1134
    %v1325 = vunpack.c.l.b16 %v1135
    %v1326 = vunpack.c.h.b16 %v1135
    %v1327 = vunpack.c.l.b16 %v1136
    %v1328 = vunpack.c.h.b16 %v1136
    %v1329 = vpack.c.b16 %v1205, %v1201
    %v1330 = vpack.c.b16 %v1206, %v1202
    %v1331 = vpack.c.b16 %v1207, %v1203
    %v1332 = vpack.c.b16 %v1208, %v1204
    %v1333 = vpack.c.b16 %v1213, %v1209
    %v1334 = vpack.c.b16 %v1214, %v1210
    %v1335 = vpack.c.b16 %v1215, %v1211
    %v1336 = vpack.c.b16 %v1216, %v1212
    %v1337 = vpack.c.b16 %v1221, %v1217
    %v1338 = vpack.c.b16 %v1222, %v1218
    %v1339 = vpack.c.b16 %v1223, %v1219
    %v1340 = vpack.c.b16 %v1224, %v1220
    %v1341 = vpack.c.b16 %v1229, %v1225
    %v1342 = vpack.c.b16 %v1230, %v1226
    %v1343 = vpack.c.b16 %v1231, %v1227
    %v1344 = vpack.c.b16 %v1232, %v1228
    %v1345 = vpack.c.b16 %v1237, %v1233
    %v1346 = vpack.c.b16 %v1238, %v1234
    %v1347 = vpack.c.b16 %v1239, %v1235
    %v1348 = vpack.c.b16 %v1240, %v1236
    %v1349 = vpack.c.b16 %v1245, %v1241
    %v1350 = vpack.c.b16 %v1246, %v1242
    %v1351 = vpack.c.b16 %v1247, %v1243
    %v1352 = vpack.c.b16 %v1248, %v1244
    %v1353 = vpack.c.b16 %v1253, %v1249
    %v1354 = vpack.c.b16 %v1254, %v1250
    %v1355 = vpack.c.b16 %v1255, %v1251
    %v1356 = vpack.c.b16 %v1256, %v1252
    %v1357 = vpack.c.b16 %v1261, %v1257
    %v1358 = vpack.c.b16 %v1262, %v1258
    %v1359 = vpack.c.b16 %v1263, %v1259
    %v1360 = vpack.c.b16 %v1264, %v1260
    %v1361 = vpack.c.b16 %v1269, %v1265
    %v1362 = vpack.c.b16 %v1270, %v1266
    %v1363 = vpack.c.b16 %v1271, %v1267
    %v1364 = vpack.c.b16 %v1272, %v1268
    %v1365 = vpack.c.b16 %v1277, %v1273
    %v1366 = vpack.c.b16 %v1278, %v1274
    %v1367 = vpack.c.b16 %v1279, %v1275
    %v1368 = vpack.c.b16 %v1280, %v1276
    %v1369 = vpack.c.b16 %v1285, %v1281
    %v1370 = vpack.c.b16 %v1286, %v1282
    %v1371 = vpack.c.b16 %v1287, %v1283
    %v1372 = vpack.c.b16 %v1288, %v1284
    %v1373 = vpack.c.b16 %v1293, %v1289
    %v1374 = vpack.c.b16 %v1294, %v1290
    %v1375 = vpack.c.b16 %v1295, %v1291
    %v1376 = vpack.c.b16 %v1296, %v1292
    %v1377 = vpack.c.b16 %v1301, %v1297
    %v1378 = vpack.c.b16 %v1302, %v1298
    %v1379 = vpack.c.b16 %v1303, %v1299
    %v1380 = vpack.c.b16 %v1304, %v1300
    %v1381 = vpack.c.b16 %v1309, %v1305
    %v1382 = vpack.c.b16 %v1310, %v1306
    %v1383 = vpack.c.b16 %v1311, %v1307
    %v1384 = vpack.c.b16 %v1312, %v1308
    %v1385 = vpack.c.b16 %v1317, %v1313
    %v1386 = vpack.c.b16 %v1318, %v1314
    %v1387 = vpack.c.b16 %v1319, %v1315
    %v1388 = vpack.c.b16 %v1320, %v1316
    %v1389 = vpack.c.b16 %v1325, %v1321
    %v1390 = vpack.c.b16 %v1326, %v1322
    %v1391 = vpack.c.b16 %v1327, %v1323
    %v1392 = vpack.c.b16 %v1328, %v1324
    %1457 = vmatpush.bf16.msra.mxu0 %v1357
    %1458 = vmatpush.bf16.msra.mxu0 %v1353
    %1459 = vmatpush.bf16.msra.mxu0 %v1349
    %1460 = vmatpush.bf16.msra.mxu0 %v1345
    %1461 = vmatpush.bf16.msra.mxu0 %v1341
    %1462 = vmatpush.bf16.msra.mxu0 %v1337
    %1463 = vmatpush.bf16.msra.mxu0 %v1333
    %1464 = vmatpush.bf16.msra.mxu0 %v1329
    %1465 = vmatmul.bf16.gmra.mxu0 %v1071
    %v1466 = vpop.f32.mrf.mxu0
    %v1467 = vadd.f32 0.0, %v1466
    %v1468 = vpop.f32.mrf.mxu0
    %v1469 = vadd.f32 0.0, %v1468
    %1470 = vdwg.mxu0
    %1471 = vmatpush.bf16.msra.mxu0 %v1389
    %1472 = vmatpush.bf16.msra.mxu0 %v1385
    %1473 = vmatpush.bf16.msra.mxu0 %v1381
    %1474 = vmatpush.bf16.msra.mxu0 %v1377
    %1475 = vmatpush.bf16.msra.mxu0 %v1373
    %1476 = vmatpush.bf16.msra.mxu0 %v1369
    %1477 = vmatpush.bf16.msra.mxu0 %v1365
    %1478 = vmatpush.bf16.msra.mxu0 %v1361
    %1479 = vmatmul.bf16.gmra.mxu0 %v1072
    %v1480 = vpop.f32.mrf.mxu0
    %v1481 = vadd.f32 %v1467, %v1480
    %v1482 = vpop.f32.mrf.mxu0
    %v1483 = vadd.f32 %v1469, %v1482
    %1484 = vdwg.mxu0
    %1485 = vmatpush.bf16.msra.mxu0 %v1358
    %1486 = vmatpush.bf16.msra.mxu0 %v1354
    %1487 = vmatpush.bf16.msra.mxu0 %v1350
    %1488 = vmatpush.bf16.msra.mxu0 %v1346
    %1489 = vmatpush.bf16.msra.mxu0 %v1342
    %1490 = vmatpush.bf16.msra.mxu0 %v1338
    %1491 = vmatpush.bf16.msra.mxu0 %v1334
    %1492 = vmatpush.bf16.msra.mxu0 %v1330
    %1493 = vmatmul.bf16.gmra.mxu0 %v1071
    %v1494 = vpop.f32.mrf.mxu0
    %v1495 = vadd.f32 0.0, %v1494
    %v1496 = vpop.f32.mrf.mxu0
    %v1497 = vadd.f32 0.0, %v1496
    %1498 = vdwg.mxu0
    %1499 = vmatpush.bf16.msra.mxu0 %v1390
    %1500 = vmatpush.bf16.msra.mxu0 %v1386
    %1501 = vmatpush.bf16.msra.mxu0 %v1382
    %1502 = vmatpush.bf16.msra.mxu0 %v1378
    %1503 = vmatpush.bf16.msra.mxu0 %v1374
    %1504 = vmatpush.bf16.msra.mxu0 %v1370
    %1505 = vmatpush.bf16.msra.mxu0 %v1366
    %1506 = vmatpush.bf16.msra.mxu0 %v1362
    %1507 = vmatmul.bf16.gmra.mxu0 %v1072
    %v1508 = vpop.f32.mrf.mxu0
    %v1509 = vadd.f32 %v1495, %v1508
    %v1510 = vpop.f32.mrf.mxu0
    %v1511 = vadd.f32 %v1497, %v1510
    %1512 = vdwg.mxu0
    %1513 = vmatpush.bf16.msra.mxu0 %v1359
    %1514 = vmatpush.bf16.msra.mxu0 %v1355
    %1515 = vmatpush.bf16.msra.mxu0 %v1351
    %1516 = vmatpush.bf16.msra.mxu0 %v1347
    %1517 = vmatpush.bf16.msra.mxu0 %v1343
    %1518 = vmatpush.bf16.msra.mxu0 %v1339
    %1519 = vmatpush.bf16.msra.mxu0 %v1335
    %1520 = vmatpush.bf16.msra.mxu0 %v1331
    %1521 = vmatmul.bf16.gmra.mxu0 %v1071
    %v1522 = vpop.f32.mrf.mxu0
    %v1523 = vadd.f32 0.0, %v1522
    %v1524 = vpop.f32.mrf.mxu0
    %v1525 = vadd.f32 0.0, %v1524
    %1526 = vdwg.mxu0
    %1527 = vmatpush.bf16.msra.mxu0 %v1391
    %1528 = vmatpush.bf16.msra.mxu0 %v1387
    %1529 = vmatpush.bf16.msra.mxu0 %v1383
    %1530 = vmatpush.bf16.msra.mxu0 %v1379
    %1531 = vmatpush.bf16.msra.mxu0 %v1375
    %1532 = vmatpush.bf16.msra.mxu0 %v1371
    %1533 = vmatpush.bf16.msra.mxu0 %v1367
    %1534 = vmatpush.bf16.msra.mxu0 %v1363
    %1535 = vmatmul.bf16.gmra.mxu0 %v1072
    %v1536 = vpop.f32.mrf.mxu0
    %v1537 = vadd.f32 %v1523, %v1536
    %v1538 = vpop.f32.mrf.mxu0
    %v1539 = vadd.f32 %v1525, %v1538
    %1540 = vdwg.mxu0
    %1541 = vmatpush.bf16.msra.mxu0 %v1360
    %1542 = vmatpush.bf16.msra.mxu0 %v1356
    %1543 = vmatpush.bf16.msra.mxu0 %v1352
    %1544 = vmatpush.bf16.msra.mxu0 %v1348
    %1545 = vmatpush.bf16.msra.mxu0 %v1344
    %1546 = vmatpush.bf16.msra.mxu0 %v1340
    %1547 = vmatpush.bf16.msra.mxu0 %v1336
    %1548 = vmatpush.bf16.msra.mxu0 %v1332
    %1549 = vmatmul.bf16.gmra.mxu0 %v1071
    %v1550 = vpop.f32.mrf.mxu0
    %v1551 = vadd.f32 0.0, %v1550
    %v1552 = vpop.f32.mrf.mxu0
    %v1553 = vadd.f32 0.0, %v1552
    %1554 = vdwg.mxu0
    %1555 = vmatpush.bf16.msra.mxu0 %v1392
    %1556 = vmatpush.bf16.msra.mxu0 %v1388
    %1557 = vmatpush.bf16.msra.mxu0 %v1384
    %1558 = vmatpush.bf16.msra.mxu0 %v1380
    %1559 = vmatpush.bf16.msra.mxu0 %v1376
    %1560 = vmatpush.bf16.msra.mxu0 %v1372
    %1561 = vmatpush.bf16.msra.mxu0 %v1368
    %1562 = vmatpush.bf16.msra.mxu0 %v1364
    %1563 = vmatmul.bf16.gmra.mxu0 %v1072
    %v1564 = vpop.f32.mrf.mxu0
    %v1565 = vadd.f32 %v1551, %v1564
    %v1566 = vpop.f32.mrf.mxu0
    %v1567 = vadd.f32 %v1553, %v1566
    %1568 = vdwg.mxu0
    %v1569 = vsel %vm84, %v1481, %v1537
    %v1570 = vsel %vm84, %v1509, %v1565
    %v1571 = vsel %vm85, %v1483, %v1539
    %v1572 = vsel %vm85, %v1511, %v1567
    %v1573 = vpack.c.bf16 %v1571, %v1569
    %v1574 = vpack.c.bf16 %v1572, %v1570
    %1575 = vmatpush.bf16.msra.mxu0 %v1053
    %1576 = vmatpush.bf16.msra.mxu0 %v1051
    %1577 = vmatpush.bf16.msra.mxu0 %v1049
    %1578 = vmatpush.bf16.msra.mxu0 %v1047
    %1579 = vmatpush.bf16.msra.mxu0 %v1045
    %1580 = vmatpush.bf16.msra.mxu0 %v1043
    %1581 = vmatpush.bf16.msra.mxu0 %v1041
    %1582 = vmatpush.bf16.msra.mxu0 %v1039
    %1583 = vmatmul.bf16.gmra.mxu0 %v1573
    %v1584 = vpop.f32.mrf.mxu0
    %v1585 = vadd.f32 0.0, %v1584
    %v1586 = vpop.f32.mrf.mxu0
    %v1587 = vadd.f32 0.0, %v1586
    %1588 = vdwg.mxu0
    %1589 = vmatpush.bf16.msra.mxu0 %v1069
    %1590 = vmatpush.bf16.msra.mxu0 %v1067
    %1591 = vmatpush.bf16.msra.mxu0 %v1065
    %1592 = vmatpush.bf16.msra.mxu0 %v1063
    %1593 = vmatpush.bf16.msra.mxu0 %v1061
    %1594 = vmatpush.bf16.msra.mxu0 %v1059
    %1595 = vmatpush.bf16.msra.mxu0 %v1057
    %1596 = vmatpush.bf16.msra.mxu0 %v1055
    %1597 = vmatmul.bf16.gmra.mxu0 %v1574
    %v1598 = vpop.f32.mrf.mxu0
    %v1599 = vadd.f32 %v1585, %v1598
    %v1600 = vpop.f32.mrf.mxu0
    %v1601 = vadd.f32 %v1587, %v1600
    %1602 = vdwg.mxu0
    %1603 = vmatpush.bf16.msra.mxu0 %v1054
    %1604 = vmatpush.bf16.msra.mxu0 %v1052
    %1605 = vmatpush.bf16.msra.mxu0 %v1050
    %1606 = vmatpush.bf16.msra.mxu0 %v1048
    %1607 = vmatpush.bf16.msra.mxu0 %v1046
    %1608 = vmatpush.bf16.msra.mxu0 %v1044
    %1609 = vmatpush.bf16.msra.mxu0 %v1042
    %1610 = vmatpush.bf16.msra.mxu0 %v1040
    %1611 = vmatmul.bf16.gmra.mxu0 %v1573
    %v1612 = vpop.f32.mrf.mxu0
    %v1613 = vadd.f32 0.0, %v1612
    %v1614 = vpop.f32.mrf.mxu0
    %v1615 = vadd.f32 0.0, %v1614
    %1616 = vdwg.mxu0
    %1617 = vmatpush.bf16.msra.mxu0 %v1070
    %1618 = vmatpush.bf16.msra.mxu0 %v1068
    %1619 = vmatpush.bf16.msra.mxu0 %v1066
    %1620 = vmatpush.bf16.msra.mxu0 %v1064
    %1621 = vmatpush.bf16.msra.mxu0 %v1062
    %1622 = vmatpush.bf16.msra.mxu0 %v1060
    %1623 = vmatpush.bf16.msra.mxu0 %v1058
    %1624 = vmatpush.bf16.msra.mxu0 %v1056
    %1625 = vmatmul.bf16.gmra.mxu0 %v1574
    %v1626 = vpop.f32.mrf.mxu0
    %v1627 = vadd.f32 %v1613, %v1626
    %v1628 = vpop.f32.mrf.mxu0
    %v1629 = vadd.f32 %v1615, %v1628
    %1630 = vdwg.mxu0
    %v1631 = vadd.f32 %v229, %v1599
    %v1632 = vadd.f32 %v230, %v1627
    %v1633 = vadd.f32 %v231, %v1601
    %v1634 = vadd.f32 %v232, %v1629
    %v1635 = vpack.c.bf16 %v1633, %v1631
    %v1636 = vpack.c.bf16 %v1634, %v1632
    %v1637 = vld [vmem:[#allocation7] sm:$0xff]
    %v1638 = vld [vmem:[#allocation7 + $0x8] sm:$0xff]
    %v1639 = vld [vmem:[#allocation7 + $0x10] sm:$0xf]
    %v1640 = vld [vmem:[#allocation7 + $0x14] sm:$0xff]
    %v1641 = vld [vmem:[#allocation7 + $0x1c] sm:$0xff]
    %v1642 = vld [vmem:[#allocation7 + $0x24] sm:$0xf]
    %v1643 = vld [vmem:[#allocation7 + $0x28] sm:$0xff]
    %v1644 = vld [vmem:[#allocation7 + $0x30] sm:$0xff]
    %v1645 = vld [vmem:[#allocation7 + $0x38] sm:$0xf]
    %v1646 = vld [vmem:[#allocation7 + $0x3c] sm:$0xff]
    %v1647 = vld [vmem:[#allocation7 + $0x44] sm:$0xff]
    %v1648 = vld [vmem:[#allocation7 + $0x4c] sm:$0xf]
    %v1649 = vld [vmem:[#allocation7 + $0x50] sm:$0xff]
    %v1650 = vld [vmem:[#allocation7 + $0x58] sm:$0xff]
    %v1651 = vld [vmem:[#allocation7 + $0x60] sm:$0xf]
    %v1652 = vld [vmem:[#allocation7 + $0x64] sm:$0xff]
    %v1653 = vld [vmem:[#allocation7 + $0x6c] sm:$0xff]
    %v1654 = vld [vmem:[#allocation7 + $0x74] sm:$0xf]
    %v1655 = vld [vmem:[#allocation7 + $0x78] sm:$0xff]
    %v1656 = vld [vmem:[#allocation7 + $0x80] sm:$0xff]
    %v1657 = vld [vmem:[#allocation7 + $0x88] sm:$0xf]
    %v1658 = vld [vmem:[#allocation7 + $0x8c] sm:$0xff]
    %v1659 = vld [vmem:[#allocation7 + $0x94] sm:$0xff]
    %v1660 = vld [vmem:[#allocation7 + $0x9c] sm:$0xf]
    %v1661 = vld [vmem:[#allocation7 + $0xa0] sm:$0xff]
    %v1662 = vld [vmem:[#allocation7 + $0xa8] sm:$0xff]
    %v1663 = vld [vmem:[#allocation7 + $0xb0] sm:$0xf]
    %v1664 = vld [vmem:[#allocation7 + $0xb4] sm:$0xff]
    %v1665 = vld [vmem:[#allocation7 + $0xbc] sm:$0xff]
    %v1666 = vld [vmem:[#allocation7 + $0xc4] sm:$0xf]
    %v1667 = vld [vmem:[#allocation7 + $0xc8] sm:$0xff]
    %v1668 = vld [vmem:[#allocation7 + $0xd0] sm:$0xff]
    %v1669 = vld [vmem:[#allocation7 + $0xd8] sm:$0xf]
    %v1670 = vld [vmem:[#allocation7 + $0xdc] sm:$0xff]
    %v1671 = vld [vmem:[#allocation7 + $0xe4] sm:$0xff]
    %v1672 = vld [vmem:[#allocation7 + $0xec] sm:$0xf]
    %v1673 = vld [vmem:[#allocation7 + $0xf0] sm:$0xff]
    %v1674 = vld [vmem:[#allocation7 + $0xf8] sm:$0xff]
    %v1675 = vld [vmem:[#allocation7 + $0x100] sm:$0xf]
    %v1676 = vld [vmem:[#allocation7 + $0x104] sm:$0xff]
    %v1677 = vld [vmem:[#allocation7 + $0x10c] sm:$0xff]
    %v1678 = vld [vmem:[#allocation7 + $0x114] sm:$0xf]
    %v1679 = vld [vmem:[#allocation7 + $0x118] sm:$0xff]
    %v1680 = vld [vmem:[#allocation7 + $0x120] sm:$0xff]
    %v1681 = vld [vmem:[#allocation7 + $0x128] sm:$0xf]
    %v1682 = vld [vmem:[#allocation7 + $0x12c] sm:$0xff]
    %v1683 = vld [vmem:[#allocation7 + $0x134] sm:$0xff]
    %v1684 = vld [vmem:[#allocation7 + $0x13c] sm:$0xf]
    %v1685 = vld [vmem:[#allocation7 + $0x140] sm:$0xff]
    %v1686 = vld [vmem:[#allocation7 + $0x148] sm:$0xff]
    %v1687 = vld [vmem:[#allocation7 + $0x150] sm:$0xf]
    %v1688 = vld [vmem:[#allocation7 + $0x154] sm:$0xff]
    %v1689 = vld [vmem:[#allocation7 + $0x15c] sm:$0xff]
    %v1690 = vld [vmem:[#allocation7 + $0x164] sm:$0xf]
    %v1691 = vld [vmem:[#allocation7 + $0x168] sm:$0xff]
    %v1692 = vld [vmem:[#allocation7 + $0x170] sm:$0xff]
    %v1693 = vld [vmem:[#allocation7 + $0x178] sm:$0xf]
    %v1694 = vld [vmem:[#allocation7 + $0x17c] sm:$0xff]
    %v1695 = vld [vmem:[#allocation7 + $0x184] sm:$0xff]
    %v1696 = vld [vmem:[#allocation7 + $0x18c] sm:$0xf]
    %v1697 = vld [vmem:[#allocation7 + $0x190] sm:$0xff]
    %v1698 = vld [vmem:[#allocation7 + $0x198] sm:$0xff]
    %v1699 = vld [vmem:[#allocation7 + $0x1a0] sm:$0xf]
    %v1700 = vld [vmem:[#allocation7 + $0x1a4] sm:$0xff]
    %v1701 = vld [vmem:[#allocation7 + $0x1ac] sm:$0xff]
    %v1702 = vld [vmem:[#allocation7 + $0x1b4] sm:$0xf]
    %v1703 = vld [vmem:[#allocation7 + $0x1b8] sm:$0xff]
    %v1704 = vld [vmem:[#allocation7 + $0x1c0] sm:$0xff]
    %v1705 = vld [vmem:[#allocation7 + $0x1c8] sm:$0xf]
    %v1706 = vld [vmem:[#allocation7 + $0x1cc] sm:$0xff]
    %v1707 = vld [vmem:[#allocation7 + $0x1d4] sm:$0xff]
    %v1708 = vld [vmem:[#allocation7 + $0x1dc] sm:$0xf]
    %v1709 = vld [vmem:[#allocation7 + $0x1e0] sm:$0xff]
    %v1710 = vld [vmem:[#allocation7 + $0x1e8] sm:$0xff]
    %v1711 = vld [vmem:[#allocation7 + $0x1f0] sm:$0xf]
    %v1712 = vld [vmem:[#allocation7 + $0x1f4] sm:$0xff]
    %v1713 = vld [vmem:[#allocation7 + $0x1fc] sm:$0xff]
    %v1714 = vld [vmem:[#allocation7 + $0x204] sm:$0xf]
    %v1715 = vld [vmem:[#allocation7 + $0x208] sm:$0xff]
    %v1716 = vld [vmem:[#allocation7 + $0x210] sm:$0xff]
    %v1717 = vld [vmem:[#allocation7 + $0x218] sm:$0xf]
    %v1718 = vld [vmem:[#allocation7 + $0x21c] sm:$0xff]
    %v1719 = vld [vmem:[#allocation7 + $0x224] sm:$0xff]
    %v1720 = vld [vmem:[#allocation7 + $0x22c] sm:$0xf]
    %v1721 = vld [vmem:[#allocation7 + $0x230] sm:$0xff]
    %v1722 = vld [vmem:[#allocation7 + $0x238] sm:$0xff]
    %v1723 = vld [vmem:[#allocation7 + $0x240] sm:$0xf]
    %v1724 = vld [vmem:[#allocation7 + $0x244] sm:$0xff]
    %v1725 = vld [vmem:[#allocation7 + $0x24c] sm:$0xff]
    %v1726 = vld [vmem:[#allocation7 + $0x254] sm:$0xf]
    %v1727 = vld [vmem:[#allocation7 + $0x258] sm:$0xff]
    %v1728 = vld [vmem:[#allocation7 + $0x260] sm:$0xff]
    %v1729 = vld [vmem:[#allocation7 + $0x268] sm:$0xf]
    %v1730 = vld [vmem:[#allocation7 + $0x26c] sm:$0xff]
    %v1731 = vld [vmem:[#allocation7 + $0x274] sm:$0xff]
    %v1732 = vld [vmem:[#allocation7 + $0x27c] sm:$0xf]
    %v1829 = vunpack.c.l.b16 %v1637
    %v1830 = vunpack.c.h.b16 %v1637
    %v1831 = vunpack.c.l.b16 %v1638
    %v1832 = vunpack.c.h.b16 %v1638
    %v1833 = vunpack.c.l.b16 %v1639
    %v1834 = vunpack.c.l.b16 %v1640
    %v1835 = vunpack.c.h.b16 %v1640
    %v1836 = vunpack.c.l.b16 %v1641
    %v1837 = vunpack.c.h.b16 %v1641
    %v1838 = vunpack.c.l.b16 %v1642
    %v1839 = vunpack.c.l.b16 %v1643
    %v1840 = vunpack.c.h.b16 %v1643
    %v1841 = vunpack.c.l.b16 %v1644
    %v1842 = vunpack.c.h.b16 %v1644
    %v1843 = vunpack.c.l.b16 %v1645
    %v1844 = vunpack.c.l.b16 %v1646
    %v1845 = vunpack.c.h.b16 %v1646
    %v1846 = vunpack.c.l.b16 %v1647
    %v1847 = vunpack.c.h.b16 %v1647
    %v1848 = vunpack.c.l.b16 %v1648
    %v1849 = vunpack.c.l.b16 %v1649
    %v1850 = vunpack.c.h.b16 %v1649
    %v1851 = vunpack.c.l.b16 %v1650
    %v1852 = vunpack.c.h.b16 %v1650
    %v1853 = vunpack.c.l.b16 %v1651
    %v1854 = vunpack.c.l.b16 %v1652
    %v1855 = vunpack.c.h.b16 %v1652
    %v1856 = vunpack.c.l.b16 %v1653
    %v1857 = vunpack.c.h.b16 %v1653
    %v1858 = vunpack.c.l.b16 %v1654
    %v1859 = vunpack.c.l.b16 %v1655
    %v1860 = vunpack.c.h.b16 %v1655
    %v1861 = vunpack.c.l.b16 %v1656
    %v1862 = vunpack.c.h.b16 %v1656
    %v1863 = vunpack.c.l.b16 %v1657
    %v1864 = vunpack.c.l.b16 %v1658
    %v1865 = vunpack.c.h.b16 %v1658
    %v1866 = vunpack.c.l.b16 %v1659
    %v1867 = vunpack.c.h.b16 %v1659
    %v1868 = vunpack.c.l.b16 %v1660
    %v1869 = vunpack.c.l.b16 %v1661
    %v1870 = vunpack.c.h.b16 %v1661
    %v1871 = vunpack.c.l.b16 %v1662
    %v1872 = vunpack.c.h.b16 %v1662
    %v1873 = vunpack.c.l.b16 %v1663
    %v1874 = vunpack.c.l.b16 %v1664
    %v1875 = vunpack.c.h.b16 %v1664
    %v1876 = vunpack.c.l.b16 %v1665
    %v1877 = vunpack.c.h.b16 %v1665
    %v1878 = vunpack.c.l.b16 %v1666
    %v1879 = vunpack.c.l.b16 %v1667
    %v1880 = vunpack.c.h.b16 %v1667
    %v1881 = vunpack.c.l.b16 %v1668
    %v1882 = vunpack.c.h.b16 %v1668
    %v1883 = vunpack.c.l.b16 %v1669
    %v1884 = vunpack.c.l.b16 %v1670
    %v1885 = vunpack.c.h.b16 %v1670
    %v1886 = vunpack.c.l.b16 %v1671
    %v1887 = vunpack.c.h.b16 %v1671
    %v1888 = vunpack.c.l.b16 %v1672
    %v1889 = vunpack.c.l.b16 %v1673
    %v1890 = vunpack.c.h.b16 %v1673
    %v1891 = vunpack.c.l.b16 %v1674
    %v1892 = vunpack.c.h.b16 %v1674
    %v1893 = vunpack.c.l.b16 %v1675
    %v1894 = vunpack.c.l.b16 %v1676
    %v1895 = vunpack.c.h.b16 %v1676
    %v1896 = vunpack.c.l.b16 %v1677
    %v1897 = vunpack.c.h.b16 %v1677
    %v1898 = vunpack.c.l.b16 %v1678
    %v1899 = vunpack.c.l.b16 %v1679
    %v1900 = vunpack.c.h.b16 %v1679
    %v1901 = vunpack.c.l.b16 %v1680
    %v1902 = vunpack.c.h.b16 %v1680
    %v1903 = vunpack.c.l.b16 %v1681
    %v1904 = vunpack.c.l.b16 %v1682
    %v1905 = vunpack.c.h.b16 %v1682
    %v1906 = vunpack.c.l.b16 %v1683
    %v1907 = vunpack.c.h.b16 %v1683
    %v1908 = vunpack.c.l.b16 %v1684
    %v1909 = vunpack.c.l.b16 %v1685
    %v1910 = vunpack.c.h.b16 %v1685
    %v1911 = vunpack.c.l.b16 %v1686
    %v1912 = vunpack.c.h.b16 %v1686
    %v1913 = vunpack.c.l.b16 %v1687
    %v1914 = vunpack.c.l.b16 %v1688
    %v1915 = vunpack.c.h.b16 %v1688
    %v1916 = vunpack.c.l.b16 %v1689
    %v1917 = vunpack.c.h.b16 %v1689
    %v1918 = vunpack.c.l.b16 %v1690
    %v1919 = vunpack.c.l.b16 %v1691
    %v1920 = vunpack.c.h.b16 %v1691
    %v1921 = vunpack.c.l.b16 %v1692
    %v1922 = vunpack.c.h.b16 %v1692
    %v1923 = vunpack.c.l.b16 %v1693
    %v1924 = vunpack.c.l.b16 %v1694
    %v1925 = vunpack.c.h.b16 %v1694
    %v1926 = vunpack.c.l.b16 %v1695
    %v1927 = vunpack.c.h.b16 %v1695
    %v1928 = vunpack.c.l.b16 %v1696
    %v1929 = vunpack.c.l.b16 %v1697
    %v1930 = vunpack.c.h.b16 %v1697
    %v1931 = vunpack.c.l.b16 %v1698
    %v1932 = vunpack.c.h.b16 %v1698
    %v1933 = vunpack.c.l.b16 %v1699
    %v1934 = vunpack.c.l.b16 %v1700
    %v1935 = vunpack.c.h.b16 %v1700
    %v1936 = vunpack.c.l.b16 %v1701
    %v1937 = vunpack.c.h.b16 %v1701
    %v1938 = vunpack.c.l.b16 %v1702
    %v1939 = vunpack.c.l.b16 %v1703
    %v1940 = vunpack.c.h.b16 %v1703
    %v1941 = vunpack.c.l.b16 %v1704
    %v1942 = vunpack.c.h.b16 %v1704
    %v1943 = vunpack.c.l.b16 %v1705
    %v1944 = vunpack.c.l.b16 %v1706
    %v1945 = vunpack.c.h.b16 %v1706
    %v1946 = vunpack.c.l.b16 %v1707
    %v1947 = vunpack.c.h.b16 %v1707
    %v1948 = vunpack.c.l.b16 %v1708
    %v1949 = vunpack.c.l.b16 %v1709
    %v1950 = vunpack.c.h.b16 %v1709
    %v1951 = vunpack.c.l.b16 %v1710
    %v1952 = vunpack.c.h.b16 %v1710
    %v1953 = vunpack.c.l.b16 %v1711
    %v1954 = vunpack.c.l.b16 %v1712
    %v1955 = vunpack.c.h.b16 %v1712
    %v1956 = vunpack.c.l.b16 %v1713
    %v1957 = vunpack.c.h.b16 %v1713
    %v1958 = vunpack.c.l.b16 %v1714
    %v1959 = vunpack.c.l.b16 %v1715
    %v1960 = vunpack.c.h.b16 %v1715
    %v1961 = vunpack.c.l.b16 %v1716
    %v1962 = vunpack.c.h.b16 %v1716
    %v1963 = vunpack.c.l.b16 %v1717
    %v1964 = vunpack.c.l.b16 %v1718
    %v1965 = vunpack.c.h.b16 %v1718
    %v1966 = vunpack.c.l.b16 %v1719
    %v1967 = vunpack.c.h.b16 %v1719
    %v1968 = vunpack.c.l.b16 %v1720
    %v1969 = vunpack.c.l.b16 %v1721
    %v1970 = vunpack.c.h.b16 %v1721
    %v1971 = vunpack.c.l.b16 %v1722
    %v1972 = vunpack.c.h.b16 %v1722
    %v1973 = vunpack.c.l.b16 %v1723
    %v1974 = vunpack.c.l.b16 %v1724
    %v1975 = vunpack.c.h.b16 %v1724
    %v1976 = vunpack.c.l.b16 %v1725
    %v1977 = vunpack.c.h.b16 %v1725
    %v1978 = vunpack.c.l.b16 %v1726
    %v1979 = vunpack.c.l.b16 %v1727
    %v1980 = vunpack.c.h.b16 %v1727
    %v1981 = vunpack.c.l.b16 %v1728
    %v1982 = vunpack.c.h.b16 %v1728
    %v1983 = vunpack.c.l.b16 %v1729
    %v1984 = vunpack.c.l.b16 %v1730
    %v1985 = vunpack.c.h.b16 %v1730
    %v1986 = vunpack.c.l.b16 %v1731
    %v1987 = vunpack.c.h.b16 %v1731
    %v1988 = vunpack.c.l.b16 %v1732
    %v1989 = vpack.c.b16 %v1834, %v1829
    %v1990 = vpack.c.b16 %v1835, %v1830
    %v1991 = vpack.c.b16 %v1836, %v1831
    %v1992 = vpack.c.b16 %v1837, %v1832
    %v1993 = vpack.c.b16 %v1838, %v1833
    %v1994 = vpack.c.b16 %v1844, %v1839
    %v1995 = vpack.c.b16 %v1845, %v1840
    %v1996 = vpack.c.b16 %v1846, %v1841
    %v1997 = vpack.c.b16 %v1847, %v1842
    %v1998 = vpack.c.b16 %v1848, %v1843
    %v1999 = vpack.c.b16 %v1854, %v1849
    %v2000 = vpack.c.b16 %v1855, %v1850
    %v2001 = vpack.c.b16 %v1856, %v1851
    %v2002 = vpack.c.b16 %v1857, %v1852
    %v2003 = vpack.c.b16 %v1858, %v1853
    %v2004 = vpack.c.b16 %v1864, %v1859
    %v2005 = vpack.c.b16 %v1865, %v1860
    %v2006 = vpack.c.b16 %v1866, %v1861
    %v2007 = vpack.c.b16 %v1867, %v1862
    %v2008 = vpack.c.b16 %v1868, %v1863
    %v2009 = vpack.c.b16 %v1874, %v1869
    %v2010 = vpack.c.b16 %v1875, %v1870
    %v2011 = vpack.c.b16 %v1876, %v1871
    %v2012 = vpack.c.b16 %v1877, %v1872
    %v2013 = vpack.c.b16 %v1878, %v1873
    %v2014 = vpack.c.b16 %v1884, %v1879
    %v2015 = vpack.c.b16 %v1885, %v1880
    %v2016 = vpack.c.b16 %v1886, %v1881
    %v2017 = vpack.c.b16 %v1887, %v1882
    %v2018 = vpack.c.b16 %v1888, %v1883
    %v2019 = vpack.c.b16 %v1894, %v1889
    %v2020 = vpack.c.b16 %v1895, %v1890
    %v2021 = vpack.c.b16 %v1896, %v1891
    %v2022 = vpack.c.b16 %v1897, %v1892
    %v2023 = vpack.c.b16 %v1898, %v1893
    %v2024 = vpack.c.b16 %v1904, %v1899
    %v2025 = vpack.c.b16 %v1905, %v1900
    %v2026 = vpack.c.b16 %v1906, %v1901
    %v2027 = vpack.c.b16 %v1907, %v1902
    %v2028 = vpack.c.b16 %v1908, %v1903
    %v2029 = vpack.c.b16 %v1914, %v1909
    %v2030 = vpack.c.b16 %v1915, %v1910
    %v2031 = vpack.c.b16 %v1916, %v1911
    %v2032 = vpack.c.b16 %v1917, %v1912
    %v2033 = vpack.c.b16 %v1918, %v1913
    %v2034 = vpack.c.b16 %v1924, %v1919
    %v2035 = vpack.c.b16 %v1925, %v1920
    %v2036 = vpack.c.b16 %v1926, %v1921
    %v2037 = vpack.c.b16 %v1927, %v1922
    %v2038 = vpack.c.b16 %v1928, %v1923
    %v2039 = vpack.c.b16 %v1934, %v1929
    %v2040 = vpack.c.b16 %v1935, %v1930
    %v2041 = vpack.c.b16 %v1936, %v1931
    %v2042 = vpack.c.b16 %v1937, %v1932
    %v2043 = vpack.c.b16 %v1938, %v1933
    %v2044 = vpack.c.b16 %v1944, %v1939
    %v2045 = vpack.c.b16 %v1945, %v1940
    %v2046 = vpack.c.b16 %v1946, %v1941
    %v2047 = vpack.c.b16 %v1947, %v1942
    %v2048 = vpack.c.b16 %v1948, %v1943
    %v2049 = vpack.c.b16 %v1954, %v1949
    %v2050 = vpack.c.b16 %v1955, %v1950
    %v2051 = vpack.c.b16 %v1956, %v1951
    %v2052 = vpack.c.b16 %v1957, %v1952
    %v2053 = vpack.c.b16 %v1958, %v1953
    %v2054 = vpack.c.b16 %v1964, %v1959
    %v2055 = vpack.c.b16 %v1965, %v1960
    %v2056 = vpack.c.b16 %v1966, %v1961
    %v2057 = vpack.c.b16 %v1967, %v1962
    %v2058 = vpack.c.b16 %v1968, %v1963
    %v2059 = vpack.c.b16 %v1974, %v1969
    %v2060 = vpack.c.b16 %v1975, %v1970
    %v2061 = vpack.c.b16 %v1976, %v1971
    %v2062 = vpack.c.b16 %v1977, %v1972
    %v2063 = vpack.c.b16 %v1978, %v1973
    %v2064 = vpack.c.b16 %v1984, %v1979
    %v2065 = vpack.c.b16 %v1985, %v1980
    %v2066 = vpack.c.b16 %v1986, %v1981
    %v2067 = vpack.c.b16 %v1987, %v1982
    %v2068 = vpack.c.b16 %v1988, %v1983
    %2149 = vmatpush.bf16.msra.mxu0 %v2024
    %2150 = vmatpush.bf16.msra.mxu0 %v2019
    %2151 = vmatpush.bf16.msra.mxu0 %v2014
    %2152 = vmatpush.bf16.msra.mxu0 %v2009
    %2153 = vmatpush.bf16.msra.mxu0 %v2004
    %2154 = vmatpush.bf16.msra.mxu0 %v1999
    %2155 = vmatpush.bf16.msra.mxu0 %v1994
    %2156 = vmatpush.bf16.msra.mxu0 %v1989
    %2157 = vmatmul.bf16.gmra.mxu0 %v1635
    %v2158 = vpop.f32.mrf.mxu0
    %v2159 = vadd.f32 0.0, %v2158
    %v2160 = vpop.f32.mrf.mxu0
    %2161 = vdwg.mxu0
    %2162 = vmatpush.bf16.msra.mxu0 %v2064
    %2163 = vmatpush.bf16.msra.mxu0 %v2059
    %2164 = vmatpush.bf16.msra.mxu0 %v2054
    %2165 = vmatpush.bf16.msra.mxu0 %v2049
    %2166 = vmatpush.bf16.msra.mxu0 %v2044
    %2167 = vmatpush.bf16.msra.mxu0 %v2039
    %2168 = vmatpush.bf16.msra.mxu0 %v2034
    %2169 = vmatpush.bf16.msra.mxu0 %v2029
    %2170 = vmatmul.bf16.gmra.mxu0 %v1636
    %v2171 = vpop.f32.mrf.mxu0
    %v2172 = vadd.f32 %v2159, %v2171
    %v2173 = vpop.f32.mrf.mxu0
    %2174 = vdwg.mxu0
    %2175 = vmatpush.bf16.msra.mxu0 %v2025
    %2176 = vmatpush.bf16.msra.mxu0 %v2020
    %2177 = vmatpush.bf16.msra.mxu0 %v2015
    %2178 = vmatpush.bf16.msra.mxu0 %v2010
    %2179 = vmatpush.bf16.msra.mxu0 %v2005
    %2180 = vmatpush.bf16.msra.mxu0 %v2000
    %2181 = vmatpush.bf16.msra.mxu0 %v1995
    %2182 = vmatpush.bf16.msra.mxu0 %v1990
    %2183 = vmatmul.bf16.gmra.mxu0 %v1635
    %v2184 = vpop.f32.mrf.mxu0
    %v2185 = vadd.f32 0.0, %v2184
    %v2186 = vpop.f32.mrf.mxu0
    %2187 = vdwg.mxu0
    %2188 = vmatpush.bf16.msra.mxu0 %v2065
    %2189 = vmatpush.bf16.msra.mxu0 %v2060
    %2190 = vmatpush.bf16.msra.mxu0 %v2055
    %2191 = vmatpush.bf16.msra.mxu0 %v2050
    %2192 = vmatpush.bf16.msra.mxu0 %v2045
    %2193 = vmatpush.bf16.msra.mxu0 %v2040
    %2194 = vmatpush.bf16.msra.mxu0 %v2035
    %2195 = vmatpush.bf16.msra.mxu0 %v2030
    %2196 = vmatmul.bf16.gmra.mxu0 %v1636
    %v2197 = vpop.f32.mrf.mxu0
    %v2198 = vadd.f32 %v2185, %v2197
    %v2199 = vpop.f32.mrf.mxu0
    %2200 = vdwg.mxu0
    %2201 = vmatpush.bf16.msra.mxu0 %v2026
    %2202 = vmatpush.bf16.msra.mxu0 %v2021
    %2203 = vmatpush.bf16.msra.mxu0 %v2016
    %2204 = vmatpush.bf16.msra.mxu0 %v2011
    %2205 = vmatpush.bf16.msra.mxu0 %v2006
    %2206 = vmatpush.bf16.msra.mxu0 %v2001
    %2207 = vmatpush.bf16.msra.mxu0 %v1996
    %2208 = vmatpush.bf16.msra.mxu0 %v1991
    %2209 = vmatmul.bf16.gmra.mxu0 %v1635
    %v2210 = vpop.f32.mrf.mxu0
    %v2211 = vadd.f32 0.0, %v2210
    %v2212 = vpop.f32.mrf.mxu0
    %2213 = vdwg.mxu0
    %2214 = vmatpush.bf16.msra.mxu0 %v2066
    %2215 = vmatpush.bf16.msra.mxu0 %v2061
    %2216 = vmatpush.bf16.msra.mxu0 %v2056
    %2217 = vmatpush.bf16.msra.mxu0 %v2051
    %2218 = vmatpush.bf16.msra.mxu0 %v2046
    %2219 = vmatpush.bf16.msra.mxu0 %v2041
    %2220 = vmatpush.bf16.msra.mxu0 %v2036
    %2221 = vmatpush.bf16.msra.mxu0 %v2031
    %2222 = vmatmul.bf16.gmra.mxu0 %v1636
    %v2223 = vpop.f32.mrf.mxu0
    %v2224 = vadd.f32 %v2211, %v2223
    %v2225 = vpop.f32.mrf.mxu0
    %2226 = vdwg.mxu0
    %2227 = vmatpush.bf16.msra.mxu0 %v2027
    %2228 = vmatpush.bf16.msra.mxu0 %v2022
    %2229 = vmatpush.bf16.msra.mxu0 %v2017
    %2230 = vmatpush.bf16.msra.mxu0 %v2012
    %2231 = vmatpush.bf16.msra.mxu0 %v2007
    %2232 = vmatpush.bf16.msra.mxu0 %v2002
    %2233 = vmatpush.bf16.msra.mxu0 %v1997
    %2234 = vmatpush.bf16.msra.mxu0 %v1992
    %2235 = vmatmul.bf16.gmra.mxu0 %v1635
    %v2236 = vpop.f32.mrf.mxu0
    %v2237 = vpop.f32.mrf.mxu0
    %v2238 = vadd.f32 0.0, %v2237
    %2239 = vdwg.mxu0
    %2240 = vmatpush.bf16.msra.mxu0 %v2067
    %2241 = vmatpush.bf16.msra.mxu0 %v2062
    %2242 = vmatpush.bf16.msra.mxu0 %v2057
    %2243 = vmatpush.bf16.msra.mxu0 %v2052
    %2244 = vmatpush.bf16.msra.mxu0 %v2047
    %2245 = vmatpush.bf16.msra.mxu0 %v2042
    %2246 = vmatpush.bf16.msra.mxu0 %v2037
    %2247 = vmatpush.bf16.msra.mxu0 %v2032
    %2248 = vmatmul.bf16.gmra.mxu0 %v1636
    %v2249 = vpop.f32.mrf.mxu0
    %v2250 = vpop.f32.mrf.mxu0
    %v2251 = vadd.f32 %v2238, %v2250
    %2252 = vdwg.mxu0
    %2253 = vmatpush.bf16.msra.mxu0 %v2028
    %2254 = vmatpush.bf16.msra.mxu0 %v2023
    %2255 = vmatpush.bf16.msra.mxu0 %v2018
    %2256 = vmatpush.bf16.msra.mxu0 %v2013
    %2257 = vmatpush.bf16.msra.mxu0 %v2008
    %2258 = vmatpush.bf16.msra.mxu0 %v2003
    %2259 = vmatpush.bf16.msra.mxu0 %v1998
    %2260 = vmatpush.bf16.msra.mxu0 %v1993
    %2261 = vmatmul.bf16.gmra.mxu0 %v1635
    %v2262 = vpop.f32.mrf.mxu0
    %v2263 = vpop.f32.mrf.mxu0
    %v2264 = vadd.f32 0.0, %v2263
    %2265 = vdwg.mxu0
    %2266 = vmatpush.bf16.msra.mxu0 %v2068
    %2267 = vmatpush.bf16.msra.mxu0 %v2063
    %2268 = vmatpush.bf16.msra.mxu0 %v2058
    %2269 = vmatpush.bf16.msra.mxu0 %v2053
    %2270 = vmatpush.bf16.msra.mxu0 %v2048
    %2271 = vmatpush.bf16.msra.mxu0 %v2043
    %2272 = vmatpush.bf16.msra.mxu0 %v2038
    %2273 = vmatpush.bf16.msra.mxu0 %v2033
    %2274 = vmatmul.bf16.gmra.mxu0 %v1636
    %v2275 = vpop.f32.mrf.mxu0
    %v2276 = vpop.f32.mrf.mxu0
    %v2277 = vadd.f32 %v2264, %v2276
    %2278 = vdwg.mxu0
    %v2279 = vld [vmem:[%s6] sm:$0x7]
    %v2281 = vperm.slane %v2279, 0
    %v2282 = vperm.slane %v2279, 1
    %v2283 = vperm.slane %v2279, 2
    %v2287 = vadd.f32 %v2172, %v2281
    %v2288 = vadd.f32 %v2198, %v2282
    %v2289 = vadd.f32 %v2224, %v2283
    %2290 = vst [vmem:[#allocation8] sm:$0xff] %v2287
    %2291 = vst [vmem:[#allocation8 + $0x8] sm:$0xff] %v2288
    %2292 = vst [vmem:[#allocation8 + $0x10] sm:$0xff] %v2289
    %v2293 = vld [vmem:[%s7] sm:$0x3]
    %v2295 = vperm.slane %v2293, 0
    %v2296 = vperm.slane %v2293, 1
    %v2299 = vadd.f32 %v2251, %v2295
    %v2300 = vadd.f32 %v2277, %v2296
    %2301 = vst [vmem:[#allocation9] sm:$0xff] %v2299
    %2302 = vst [vmem:[#allocation9 + $0x8] sm:$0xff] %v2300
    // Predicated region
    $region46: #{vae_decoder_forward.1} parent=1 // pred_check
      _
    $region47: #{vae_decoder_forward.1} parent=1 // pred_check_branch
      %2304 = sbr.rel (0) target = $region49
    $region48: #{vae_decoder_forward.1} parent=1 // pred_region
      %2306 = vsyncadd [#allocation4], 0
      %s2308 = sshll.u32 [#allocation8], 4
      %s2309 = int_to_ptr.vmem [resolvable:$true] %s2308
      %s2310 = sshll.u32 %s8, 4
      %s2311 = int_to_ptr.hbm [resolvable:$true] %s2310
      %2313 = dma.vmem_to_hbm [thread:$0]  %s2309, 384, %s2311, [#allocation4]
    $region49: #{vae_decoder_forward.1} parent=1 // pred_fallthru
      _
    // Predicated region
    $region50: #{vae_decoder_forward.1} parent=1 // pred_check
      _
    $region51: #{vae_decoder_forward.1} parent=1 // pred_check_branch
      %2315 = sbr.rel (0) target = $region53
    $region52: #{vae_decoder_forward.1} parent=1 // pred_region
      %2317 = vsyncadd [#allocation10], 0
      %s2319 = sshll.u32 [#allocation9], 4
      %s2320 = int_to_ptr.vmem [resolvable:$true] %s2319
      %s2321 = sshll.u32 %s9, 4
      %s2322 = int_to_ptr.hbm [resolvable:$true] %s2321
      %2324 = dma.vmem_to_hbm [thread:$0]  %s2320, 256, %s2322, [#allocation10]
    $region53: #{vae_decoder_forward.1} parent=1 // pred_fallthru
      _
    // Predicated region
    $region54: #{vae_decoder_forward.1} parent=1 // pred_check
      _
    $region55: #{vae_decoder_forward.1} parent=1 // pred_check_branch
      %2326 = sbr.rel (0) target = $region57
    $region56: #{vae_decoder_forward.1} parent=1 // pred_region
      %2328 = dma.done [#allocation4], 384
    $region57: #{vae_decoder_forward.1} parent=1 // pred_fallthru
      _
    // Predicated region
    $region58: #{vae_decoder_forward.1} parent=1 // pred_check
      _
    $region59: #{vae_decoder_forward.1} parent=1 // pred_check_branch
      %2330 = sbr.rel (0) target = $region61
    $region60: #{vae_decoder_forward.1} parent=1 // pred_region
      %2332 = dma.done [#allocation10], 256
    $region61: #{vae_decoder_forward.1} parent=1 // pred_fallthru
      _
    %2333 = vsyncpa [#allocation3], 1
    %2334 = vsyncpa [#allocation6], 1
    %2335 = vsyncpa [#allocation4], 1
    %2336 = vsyncpa [#allocation10], 1

</llo_original>
